<compile_context>
chip_gen: v5e
topology: v5e:2x2
jax: 0.10.0
libtpu: 0.0.40
codegen_flags: <defaults>
</compile_context>

<pallas_src>
import functools

import jax
import jax.numpy as jnp
from jax.experimental import pallas as pl
from jax.experimental.pallas import tpu as pltpu

_LANE = 128      # lane width (last-dim vreg axis)
_SUBLANE = 8     # f32 sublane width (second-to-last vreg axis)


def _round_up(x, m):
    return (x + m - 1) // m * m


def _conv2d_mxu_kernel(x_ref, w_ref, o_ref, *, kernel_size):
    """One (batch, Cout-tile) grid step.

    x_ref: (1, H, W_in, Cin_pad)   input tile, W_in = OW_pad + k - 1
    w_ref: (k*k, Cin_pad, CT)      tap-major weight slab for this Cout tile
    o_ref: (1, OH, OW_pad, CT)     lane-dense output tile (CT multiple of 128)
    """
    k = kernel_size
    _, H, _, cin_pad = x_ref.shape
    _, OH, OW_pad, CT = o_ref.shape

    x = x_ref[0]        # (H, W_in, Cin_pad) -- loaded once
    w = w_ref[...]      # (k*k, Cin_pad, CT)

    acc = jnp.zeros((OH * OW_pad, CT), dtype=jnp.float32)
    for kw in range(k):
        # One sublane-shifting slice per kw; the kh slices below are along the
        # major (H) axis and are cheap.
        x_w = x[:, kw:kw + OW_pad, :]                          # (H, OW_pad, Cin_pad)
        for kh in range(k):
            # OW_pad is a multiple of 8, so this reshape is layout-preserving.
            tap = x_w[kh:kh + OH].reshape(OH * OW_pad, cin_pad)
            # MXU matmul, f32 accumulation.
            acc = acc + jnp.dot(tap, w[kh * k + kw],
                                preferred_element_type=jnp.float32)
    o_ref[0] = acc.reshape(OH, OW_pad, CT)


def my_conv2d(x_nchw, weight_oihw):
    """Forward pass of MyConv2d (NCHW in, NCHW out), MXU-backed Pallas kernel."""
    B, Cin, H, W = x_nchw.shape
    Cout, Cin_w, k, k2 = weight_oihw.shape
    assert Cin == Cin_w and k == k2
    OH, OW = H - k + 1, W - k + 1

    cin_pad = _round_up(Cin, _SUBLANE)     # f32-sublane-aligned contraction dim
    ow_pad = _round_up(OW, _SUBLANE)       # keeps in-kernel reshapes layout-preserving
    w_in = ow_pad + k - 1                  # input width the kernel actually reads
    cout_pad = _round_up(Cout, _LANE)      # lane-dense output channels
    cout_tile = _LANE                      # use 256 here on v6e/v7x when cout_pad % 256 == 0

    # Layout glue (NCHW -> NHWC, OIHW -> tap-major HWIO) + zero padding.
    # TODO(synk): accept NHWC end-to-end at the caller to drop these two
    # HBM-round-trip transposes; kept so the public interface matches PyTorch.
    x_nhwc = jnp.transpose(x_nchw, (0, 2, 3, 1)).astype(jnp.float32)
    x_p = jnp.pad(x_nhwc, ((0, 0), (0, 0), (0, w_in - W), (0, cin_pad - Cin)))

    w_hwio = jnp.transpose(weight_oihw, (2, 3, 1, 0)).astype(jnp.float32)   # (k,k,Cin,Cout)
    w_p = jnp.pad(w_hwio, ((0, 0), (0, 0), (0, cin_pad - Cin), (0, cout_pad - Cout)))
    w_taps = w_p.reshape(k * k, cin_pad, cout_pad)

    grid = (B, cout_pad // cout_tile)

    # TODO(synk): for very large H*W, add an output-row grid axis with the
    # k-1 row halo handled via manual DMA (memory_space=pl.ANY + make_async_copy).
    out_padded = pl.pallas_call(
        functools.partial(_conv2d_mxu_kernel, kernel_size=k),
        out_shape=jax.ShapeDtypeStruct((B, OH, ow_pad, cout_pad), jnp.float32),
        grid=grid,
        in_specs=[
            pl.BlockSpec((1, H, w_in, cin_pad), lambda b, j: (b, 0, 0, 0)),
            pl.BlockSpec((k * k, cin_pad, cout_tile), lambda b, j: (0, 0, j)),
        ],
        out_specs=pl.BlockSpec((1, OH, ow_pad, cout_tile), lambda b, j: (b, 0, 0, j)),
        compiler_params=pltpu.CompilerParams(
            dimension_semantics=("parallel", "parallel")),
    )(x_p, w_taps)

    # Drop padding, back to PyTorch's NCHW output convention.
    out = out_padded[:, :, :OW, :Cout]
    return jnp.transpose(out, (0, 3, 1, 2))


if __name__ == "__main__":
    # Small shapes consistent with the module's forward.
    B, Cin, H, W = 2, 4, 16, 16
    Cout, k = 8, 3

    key = jax.random.PRNGKey(0)
    kx, kw_key = jax.random.split(key)
    x = jax.random.normal(kx, (B, Cin, H, W), dtype=jnp.float32)
    # Deterministic stand-in for torch.normal(0, 0.01, (Cin, k, k)) per out-channel.
    weight = 0.01 * jax.random.normal(kw_key, (Cout, Cin, k, k), dtype=jnp.float32)

    out = jax.block_until_ready(my_conv2d(x, weight))

    # Sanity check against lax conv (identical semantics to the PyTorch loops).
    ref = jax.lax.conv_general_dilated(
        x, weight, window_strides=(1, 1), padding="VALID",
        dimension_numbers=("NCHW", "OIHW", "NCHW"))
    assert out.shape == (B, Cout, H - k + 1, W - k + 1)
    assert out.dtype == jnp.float32
    assert jnp.allclose(out, ref, atol=1e-5, rtol=1e-5)

    print("KERNEL_OK")
</pallas_src>

<mosaic_0001>
module attributes {stable_mosaic.version = 11 : i64} {
  func.func @_conv2d_mxu_kernel(%arg0: i32, %arg1: i32, %arg2: memref<1x16x18x8xf32, #tpu.memory_space<vmem>>, %arg3: memref<9x8x128xf32, #tpu.memory_space<vmem>>, %arg4: memref<1x14x16x128xf32, #tpu.memory_space<vmem>>) attributes {dimension_semantics = [#tpu.dimension_semantics<parallel>, #tpu.dimension_semantics<parallel>], iteration_bounds = array<i64: 2, 1>, scalar_prefetch = 0 : i64, scratch_operands = 0 : i64, tpu.core_type = #tpu.core_type<tc>, window_params = [{transform_indices = @transform_0, window_bounds = array<i64: 1, 16, 18, 8>}, {transform_indices = @transform_1, window_bounds = array<i64: 9, 8, 128>}, {transform_indices = @transform_2, window_bounds = array<i64: 1, 14, 16, 128>}]} {
    %c0 = arith.constant 0 : index
    %c0_0 = arith.constant 0 : index
    %c0_1 = arith.constant 0 : index
    %c0_2 = arith.constant 0 : index
    %0 = vector.load %arg2[%c0, %c0_0, %c0_1, %c0_2] : memref<1x16x18x8xf32, #tpu.memory_space<vmem>>, vector<1x16x18x8xf32>
    %1 = vector.shape_cast %0 : vector<1x16x18x8xf32> to vector<16x18x8xf32>
    %c0_3 = arith.constant 0 : index
    %c0_4 = arith.constant 0 : index
    %c0_5 = arith.constant 0 : index
    %2 = vector.load %arg3[%c0_3, %c0_4, %c0_5] : memref<9x8x128xf32, #tpu.memory_space<vmem>>, vector<9x8x128xf32>
    %cst = arith.constant 0.000000e+00 : f32
    %3 = vector.broadcast %cst : f32 to vector<224x128xf32>
    %4 = vector.extract_strided_slice %1 {offsets = [0, 0, 0], sizes = [16, 16, 8], strides = [1, 1, 1]} : vector<16x18x8xf32> to vector<16x16x8xf32>
    %5 = vector.extract_strided_slice %4 {offsets = [0, 0, 0], sizes = [14, 16, 8], strides = [1, 1, 1]} : vector<16x16x8xf32> to vector<14x16x8xf32>
    %6 = vector.shape_cast %5 : vector<14x16x8xf32> to vector<224x8xf32>
    %7 = vector.extract_strided_slice %2 {offsets = [0, 0, 0], sizes = [1, 8, 128], strides = [1, 1, 1]} : vector<9x8x128xf32> to vector<1x8x128xf32>
    %8 = vector.shape_cast %7 : vector<1x8x128xf32> to vector<8x128xf32>
    %cst_6 = arith.constant dense<0.000000e+00> : vector<224x128xf32>
    %9 = tpu.matmul %6, %8, %cst_6 {dimension_numbers = #tpu.dot_dimension_numbers<[1], [0], [0], [1], [0, 0, 1, 1], [], []>} : vector<224x8xf32>, vector<8x128xf32>, vector<224x128xf32> -> vector<224x128xf32>
    %10 = arith.addf %3, %9 : vector<224x128xf32>
    %11 = vector.extract_strided_slice %4 {offsets = [1, 0, 0], sizes = [14, 16, 8], strides = [1, 1, 1]} : vector<16x16x8xf32> to vector<14x16x8xf32>
    %12 = vector.shape_cast %11 : vector<14x16x8xf32> to vector<224x8xf32>
    %13 = vector.extract_strided_slice %2 {offsets = [3, 0, 0], sizes = [1, 8, 128], strides = [1, 1, 1]} : vector<9x8x128xf32> to vector<1x8x128xf32>
    %14 = vector.shape_cast %13 : vector<1x8x128xf32> to vector<8x128xf32>
    %cst_7 = arith.constant dense<0.000000e+00> : vector<224x128xf32>
    %15 = tpu.matmul %12, %14, %cst_7 {dimension_numbers = #tpu.dot_dimension_numbers<[1], [0], [0], [1], [0, 0, 1, 1], [], []>} : vector<224x8xf32>, vector<8x128xf32>, vector<224x128xf32> -> vector<224x128xf32>
    %16 = arith.addf %10, %15 : vector<224x128xf32>
    %17 = vector.extract_strided_slice %4 {offsets = [2, 0, 0], sizes = [14, 16, 8], strides = [1, 1, 1]} : vector<16x16x8xf32> to vector<14x16x8xf32>
    %18 = vector.shape_cast %17 : vector<14x16x8xf32> to vector<224x8xf32>
    %19 = vector.extract_strided_slice %2 {offsets = [6, 0, 0], sizes = [1, 8, 128], strides = [1, 1, 1]} : vector<9x8x128xf32> to vector<1x8x128xf32>
    %20 = vector.shape_cast %19 : vector<1x8x128xf32> to vector<8x128xf32>
    %cst_8 = arith.constant dense<0.000000e+00> : vector<224x128xf32>
    %21 = tpu.matmul %18, %20, %cst_8 {dimension_numbers = #tpu.dot_dimension_numbers<[1], [0], [0], [1], [0, 0, 1, 1], [], []>} : vector<224x8xf32>, vector<8x128xf32>, vector<224x128xf32> -> vector<224x128xf32>
    %22 = arith.addf %16, %21 : vector<224x128xf32>
    %23 = vector.extract_strided_slice %1 {offsets = [0, 1, 0], sizes = [16, 16, 8], strides = [1, 1, 1]} : vector<16x18x8xf32> to vector<16x16x8xf32>
    %24 = vector.extract_strided_slice %23 {offsets = [0, 0, 0], sizes = [14, 16, 8], strides = [1, 1, 1]} : vector<16x16x8xf32> to vector<14x16x8xf32>
    %25 = vector.shape_cast %24 : vector<14x16x8xf32> to vector<224x8xf32>
    %26 = vector.extract_strided_slice %2 {offsets = [1, 0, 0], sizes = [1, 8, 128], strides = [1, 1, 1]} : vector<9x8x128xf32> to vector<1x8x128xf32>
    %27 = vector.shape_cast %26 : vector<1x8x128xf32> to vector<8x128xf32>
    %cst_9 = arith.constant dense<0.000000e+00> : vector<224x128xf32>
    %28 = tpu.matmul %25, %27, %cst_9 {dimension_numbers = #tpu.dot_dimension_numbers<[1], [0], [0], [1], [0, 0, 1, 1], [], []>} : vector<224x8xf32>, vector<8x128xf32>, vector<224x128xf32> -> vector<224x128xf32>
    %29 = arith.addf %22, %28 : vector<224x128xf32>
    %30 = vector.extract_strided_slice %23 {offsets = [1, 0, 0], sizes = [14, 16, 8], strides = [1, 1, 1]} : vector<16x16x8xf32> to vector<14x16x8xf32>
    %31 = vector.shape_cast %30 : vector<14x16x8xf32> to vector<224x8xf32>
    %32 = vector.extract_strided_slice %2 {offsets = [4, 0, 0], sizes = [1, 8, 128], strides = [1, 1, 1]} : vector<9x8x128xf32> to vector<1x8x128xf32>
    %33 = vector.shape_cast %32 : vector<1x8x128xf32> to vector<8x128xf32>
    %cst_10 = arith.constant dense<0.000000e+00> : vector<224x128xf32>
    %34 = tpu.matmul %31, %33, %cst_10 {dimension_numbers = #tpu.dot_dimension_numbers<[1], [0], [0], [1], [0, 0, 1, 1], [], []>} : vector<224x8xf32>, vector<8x128xf32>, vector<224x128xf32> -> vector<224x128xf32>
    %35 = arith.addf %29, %34 : vector<224x128xf32>
    %36 = vector.extract_strided_slice %23 {offsets = [2, 0, 0], sizes = [14, 16, 8], strides = [1, 1, 1]} : vector<16x16x8xf32> to vector<14x16x8xf32>
    %37 = vector.shape_cast %36 : vector<14x16x8xf32> to vector<224x8xf32>
    %38 = vector.extract_strided_slice %2 {offsets = [7, 0, 0], sizes = [1, 8, 128], strides = [1, 1, 1]} : vector<9x8x128xf32> to vector<1x8x128xf32>
    %39 = vector.shape_cast %38 : vector<1x8x128xf32> to vector<8x128xf32>
    %cst_11 = arith.constant dense<0.000000e+00> : vector<224x128xf32>
    %40 = tpu.matmul %37, %39, %cst_11 {dimension_numbers = #tpu.dot_dimension_numbers<[1], [0], [0], [1], [0, 0, 1, 1], [], []>} : vector<224x8xf32>, vector<8x128xf32>, vector<224x128xf32> -> vector<224x128xf32>
    %41 = arith.addf %35, %40 : vector<224x128xf32>
    %42 = vector.extract_strided_slice %1 {offsets = [0, 2, 0], sizes = [16, 16, 8], strides = [1, 1, 1]} : vector<16x18x8xf32> to vector<16x16x8xf32>
    %43 = vector.extract_strided_slice %42 {offsets = [0, 0, 0], sizes = [14, 16, 8], strides = [1, 1, 1]} : vector<16x16x8xf32> to vector<14x16x8xf32>
    %44 = vector.shape_cast %43 : vector<14x16x8xf32> to vector<224x8xf32>
    %45 = vector.extract_strided_slice %2 {offsets = [2, 0, 0], sizes = [1, 8, 128], strides = [1, 1, 1]} : vector<9x8x128xf32> to vector<1x8x128xf32>
    %46 = vector.shape_cast %45 : vector<1x8x128xf32> to vector<8x128xf32>
    %cst_12 = arith.constant dense<0.000000e+00> : vector<224x128xf32>
    %47 = tpu.matmul %44, %46, %cst_12 {dimension_numbers = #tpu.dot_dimension_numbers<[1], [0], [0], [1], [0, 0, 1, 1], [], []>} : vector<224x8xf32>, vector<8x128xf32>, vector<224x128xf32> -> vector<224x128xf32>
    %48 = arith.addf %41, %47 : vector<224x128xf32>
    %49 = vector.extract_strided_slice %42 {offsets = [1, 0, 0], sizes = [14, 16, 8], strides = [1, 1, 1]} : vector<16x16x8xf32> to vector<14x16x8xf32>
    %50 = vector.shape_cast %49 : vector<14x16x8xf32> to vector<224x8xf32>
    %51 = vector.extract_strided_slice %2 {offsets = [5, 0, 0], sizes = [1, 8, 128], strides = [1, 1, 1]} : vector<9x8x128xf32> to vector<1x8x128xf32>
    %52 = vector.shape_cast %51 : vector<1x8x128xf32> to vector<8x128xf32>
    %cst_13 = arith.constant dense<0.000000e+00> : vector<224x128xf32>
    %53 = tpu.matmul %50, %52, %cst_13 {dimension_numbers = #tpu.dot_dimension_numbers<[1], [0], [0], [1], [0, 0, 1, 1], [], []>} : vector<224x8xf32>, vector<8x128xf32>, vector<224x128xf32> -> vector<224x128xf32>
    %54 = arith.addf %48, %53 : vector<224x128xf32>
    %55 = vector.extract_strided_slice %42 {offsets = [2, 0, 0], sizes = [14, 16, 8], strides = [1, 1, 1]} : vector<16x16x8xf32> to vector<14x16x8xf32>
    %56 = vector.shape_cast %55 : vector<14x16x8xf32> to vector<224x8xf32>
    %57 = vector.extract_strided_slice %2 {offsets = [8, 0, 0], sizes = [1, 8, 128], strides = [1, 1, 1]} : vector<9x8x128xf32> to vector<1x8x128xf32>
    %58 = vector.shape_cast %57 : vector<1x8x128xf32> to vector<8x128xf32>
    %cst_14 = arith.constant dense<0.000000e+00> : vector<224x128xf32>
    %59 = tpu.matmul %56, %58, %cst_14 {dimension_numbers = #tpu.dot_dimension_numbers<[1], [0], [0], [1], [0, 0, 1, 1], [], []>} : vector<224x8xf32>, vector<8x128xf32>, vector<224x128xf32> -> vector<224x128xf32>
    %60 = arith.addf %54, %59 : vector<224x128xf32>
    %61 = vector.shape_cast %60 : vector<224x128xf32> to vector<14x16x128xf32>
    %c0_15 = arith.constant 0 : index
    %c0_16 = arith.constant 0 : index
    %c0_17 = arith.constant 0 : index
    %c0_18 = arith.constant 0 : index
    %62 = vector.load %arg4[%c0_15, %c0_16, %c0_17, %c0_18] : memref<1x14x16x128xf32, #tpu.memory_space<vmem>>, vector<1x14x16x128xf32>
    %63 = vector.shape_cast %62 : vector<1x14x16x128xf32> to vector<14x16x128xf32>
    %64 = vector.shape_cast %61 : vector<14x16x128xf32> to vector<1x14x16x128xf32>
    tpu.vector_store %arg4[%c0_15, %c0_16, %c0_17, %c0_18], %64 {strides = array<i32>} : memref<1x14x16x128xf32, #tpu.memory_space<vmem>>, vector<1x14x16x128xf32>,
    return
  }
  func.func @transform_0(%arg0: i32, %arg1: i32) -> (i32, i32, i32, i32) {
    %c0_i32 = arith.constant 0 : i32
    %c0_i32_0 = arith.constant 0 : i32
    %c0_i32_1 = arith.constant 0 : i32
    %c0_i32_2 = arith.constant 0 : i32
    return %arg0, %c0_i32, %c0_i32_0, %c0_i32_1 : i32, i32, i32, i32
  }
  func.func @transform_1(%arg0: i32, %arg1: i32) -> (i32, i32, i32) {
    %c0_i32 = arith.constant 0 : i32
    %c0_i32_0 = arith.constant 0 : i32
    %c0_i32_1 = arith.constant 0 : i32
    return %c0_i32, %c0_i32_0, %arg1 : i32, i32, i32
  }
  func.func @transform_2(%arg0: i32, %arg1: i32) -> (i32, i32, i32, i32) {
    %c0_i32 = arith.constant 0 : i32
    %c0_i32_0 = arith.constant 0 : i32
    %c0_i32_1 = arith.constant 0 : i32
    return %arg0, %c0_i32, %c0_i32_0, %arg1 : i32, i32, i32, i32
  }
}

</mosaic_0001>

<llo_original>
// kernel: tpu_custom_call.1
$region0: #{tpu_custom_call.1}
  #allocation0 [shape = 'u32[]', space=smem, size = 0x4, offset = 0x4, fixed_abs, tag = 'smem constant byte address 0x4 - core index']
  #allocation1 [shape = 'u32[72,128]{1,0:T(1,128)}', space=vmem, size = 0x9000, scoped, tag = 'internal scratch']
  %s0 = inlined_call_operand.vmem [shape: f32[2,16,18,8], index: 0, kind: input, shape index: {}]
  %s1 = inlined_call_operand.vmem [shape: f32[9,8,128], index: 1, kind: input, shape index: {}]
  %s2 = inlined_call_operand.hbm [shape: f32[2,14,16,128], index: 2, kind: output, shape index: {}]
  %s3 = sld [smem:[#allocation0]]
  $region41: #{tpu_custom_call.1} parent=0
    _
  %s5 = ssub.s32 1, %s3
  %s6 = scalar_select 0, %s5, %s3
  $region1: #{tpu_custom_call.1} parent=0
    #allocation2 [shape = 'u8[229376]{0}', space=vmem, size = 0x38000, scoped, tag = 'output window, operand 0']
    #allocation3 [shape = 's32[2]{0}', space=sflag, size = 0x8, scoped, tag = 'scoped memory for tpu_custom_call.1']
    %7 = vsyncpa [#allocation3], 0
    %s8 = scalar_lea.sflag [#allocation3], 1
    %9 = vsyncpa %s8, 0
    loop: start=0, step=1, limit=4
    $region2: #{tpu_custom_call.1} parent=1 // loop_pre_header
      _
    $region3: #{tpu_custom_call.1} parent=1 // loop_header
      %s11 = sphi 0, %s15
      %p12 = scmp.ge.s32.totalorder %s11, 4
      %s18 = sphi 0, %s30
      %s19 = sphi 0, %s26
      %s20 = sphi 0, %s18
      %s21 = sphi 0, %s19
      %s22 = sphi 0, %s20
      %s23 = sphi 0, %s21
      %s33 = sphi 0, %s35
      %s36 = sphi 0, %s33
      %s37 = sphi 0, %s36
      %s53 = sphi 0, %s37
      %s59 = sphi 0, %s61
      %s62 = sphi 0, %s59
      %s63 = sphi 0, %s62
      %s79 = sphi 0, %s63
      %s87 = sphi 0, %s89
      %s90 = sphi 0, %s87
      %s91 = sphi 0, %s90
      %s107 = sphi 0, %s91
    $region4: #{tpu_custom_call.1} parent=1 // loop_header_branch
      %14 = sbr.rel (%p12) target = $region8
    $region5: #{tpu_custom_call.1} parent=1 // loop_body
      %s16 = ssub.s32 %s11, 1
      %s17 = ssub.s32 %s11, 2
      %s24 = sadd.s32 1, %s19
      %p25 = scmp.ge.s32.totalorder %s24, 1
      %s26 = scalar_select %p25, 0, %s24
      %s27 = sadd.s32 1, %s18
      %s28 = scalar_select %p25, %s27, %s18
      %p29 = scmp.ge.s32.totalorder %s28, 2
      %s30 = scalar_select %p29, 0, %s28
      %s31 = ssub.s32 %s18, %s30
      %p32 = scmp.eq.s32.totalorder %s31, 0
      %s34 = sadd.s32 %s33, 1
      %s35 = scalar_select %p32, %s33, %s34
      %p38 = pneg %p32
      %p39 = scmp.eq.s32.totalorder %s11, 1
      %p40 = por %p38, %p39
      %p41 = scmp.ne.s32.totalorder %s33, %s36
      %p42 = scmp.eq.s32.totalorder %s11, 0
      %p43 = por %p41, %p42
      %p44 = scmp.ne.s32.totalorder %s33, %s36
      %p45 = scmp.eq.s32.totalorder %s16, 1
      %p46 = por %p44, %p45
      %p47 = scmp.ne.s32.totalorder %s36, %s37
      %p48 = scmp.eq.s32.totalorder %s16, 0
      %p49 = por %p47, %p48
      %p50 = scmp.ne.s32.totalorder %s36, %s37
      %p51 = scmp.eq.s32.totalorder %s17, 1
      %p52 = por %p50, %p51
      %p54 = scmp.ne.s32.totalorder %s37, %s53
      %p55 = scmp.eq.s32.totalorder %s17, 0
      %p56 = por %p54, %p55
      %s57 = ssub.s32 %s19, %s26
      %p58 = scmp.eq.s32.totalorder %s57, 0
      %s60 = sadd.s32 %s59, 1
      %s61 = scalar_select %p58, %s59, %s60
      %p64 = pneg %p58
      %p65 = scmp.eq.s32.totalorder %s11, 1
      %p66 = por %p64, %p65
      %p67 = scmp.ne.s32.totalorder %s59, %s62
      %p68 = scmp.eq.s32.totalorder %s11, 0
      %p69 = por %p67, %p68
      %p70 = scmp.ne.s32.totalorder %s59, %s62
      %p71 = scmp.eq.s32.totalorder %s16, 1
      %p72 = por %p70, %p71
      %p73 = scmp.ne.s32.totalorder %s62, %s63
      %p74 = scmp.eq.s32.totalorder %s16, 0
      %p75 = por %p73, %p74
      %p76 = scmp.ne.s32.totalorder %s62, %s63
      %p77 = scmp.eq.s32.totalorder %s17, 1
      %p78 = por %p76, %p77
      %p80 = scmp.ne.s32.totalorder %s63, %s79
      %p81 = scmp.eq.s32.totalorder %s17, 0
      %p82 = por %p80, %p81
      %s83 = ssub.s32 %s18, %s30
      %s84 = ssub.s32 %s19, %s26
      %s85 = sor.u32 %s83, %s84
      %p86 = scmp.eq.s32.totalorder %s85, 0
      %s88 = sadd.s32 %s87, 1
      %s89 = scalar_select %p86, %s87, %s88
      %p92 = pneg %p86
      %p93 = scmp.eq.s32.totalorder %s11, 1
      %p94 = por %p92, %p93
      %p95 = scmp.ne.s32.totalorder %s87, %s90
      %p96 = scmp.eq.s32.totalorder %s11, 0
      %p97 = por %p95, %p96
      %p98 = scmp.ne.s32.totalorder %s87, %s90
      %p99 = scmp.eq.s32.totalorder %s16, 1
      %p100 = por %p98, %p99
      %p101 = scmp.ne.s32.totalorder %s90, %s91
      %p102 = scmp.eq.s32.totalorder %s16, 0
      %p103 = por %p101, %p102
      %p104 = scmp.ne.s32.totalorder %s90, %s91
      %p105 = scmp.eq.s32.totalorder %s17, 1
      %p106 = por %p104, %p105
      %p108 = scmp.ne.s32.totalorder %s91, %s107
      %p109 = scmp.eq.s32.totalorder %s17, 0
      %p110 = por %p108, %p109
      %p111 = scmp.le.s32.totalorder 1, %s11
      %p112 = scmp.lt.s32.totalorder %s11, 3
      %p113 = pnand %p111, %p112
      %p114 = pneg %p113
      // Predicated region
      $region9: #{tpu_custom_call.1} parent=5 // pred_check
        _
      $region10: #{tpu_custom_call.1} parent=5 // pred_check_branch
        %116 = sbr.rel (%p113) target = $region12
      $region11: #{tpu_custom_call.1} parent=5 // pred_region
        %s117 = ssub.s32 %s11, 1
        // Predicated region
        $region13: #{tpu_custom_call.1} parent=11 // pred_check
          %p118 = pneg %p75
        $region14: #{tpu_custom_call.1} parent=11 // pred_check_branch
          %120 = sbr.rel (%p118) target = $region16
        $region15: #{tpu_custom_call.1} parent=11 // pred_region
          %p121 = scmp.lt.s32.totalorder %s21, 0
          %s122 = scalar_select %p121, %s21, 0
          %s123 = smul.addr %s122, 8
          %s124 = scalar_lea.vmem %s1, %s123
        $region16: #{tpu_custom_call.1} parent=11 // pred_fallthru
          _
      $region12: #{tpu_custom_call.1} parent=5 // pred_fallthru
        _
      %p125 = scmp.lt.s32.totalorder %s11, 2
      // Predicated region
      $region17: #{tpu_custom_call.1} parent=5 // pred_check
        %p126 = pneg %p125
      $region18: #{tpu_custom_call.1} parent=5 // pred_check_branch
        %128 = sbr.rel (%p126) target = $region20
      $region19: #{tpu_custom_call.1} parent=5 // pred_region
        // Predicated region
        $region21: #{tpu_custom_call.1} parent=19 // pred_check
          %p129 = pneg %p43
        $region22: #{tpu_custom_call.1} parent=19 // pred_check_branch
          %131 = sbr.rel (%p129) target = $region24
        $region23: #{tpu_custom_call.1} parent=19 // pred_region
          %p132 = scmp.lt.s32.totalorder %s18, 1
          %s133 = scalar_select %p132, %s18, 1
          %s134 = smul.addr %s133, 48
          %s135 = smul.addr %s134, 8
          %s136 = scalar_lea.vmem %s0, %s135
        $region24: #{tpu_custom_call.1} parent=19 // pred_fallthru
          _
      $region20: #{tpu_custom_call.1} parent=5 // pred_fallthru
        _
      %p137 = scmp.le.s32.totalorder 1, %s11
      %p138 = scmp.lt.s32.totalorder %s11, 3
      %p139 = pnand %p137, %p138
      %p140 = pneg %p139
      // Predicated region
      $region25: #{tpu_custom_call.1} parent=5 // pred_check
        _
      $region26: #{tpu_custom_call.1} parent=5 // pred_check_branch
        %142 = sbr.rel (%p139) target = $region28
      $region27: #{tpu_custom_call.1} parent=5 // pred_region
        %s143 = ssub.s32 %s11, 1
        %p144 = scmp.lt.s32.totalorder %s20, 1
        %s145 = scalar_select %p144, %s20, 1
        %s146 = smul.addr %s145, 48
        %s147 = smul.addr %s146, 8
        %s148 = scalar_lea.vmem %s0, %s147
        %p149 = pneg %p49
        %p150 = pneg %p46
        %p151 = scmp.lt.s32.totalorder %s21, 0
        %s152 = scalar_select %p151, %s21, 0
        %s153 = smul.addr %s152, 8
        %s154 = scalar_lea.vmem %s1, %s153
        %p155 = pneg %p75
        %p156 = pneg %p72
        %p157 = pneg %p103
        %p158 = pneg %p100
        %s159 = sand.u32 %s90, 1
        %s160 = scalar_lea.sflag [#allocation3], %s159
        %s161 = sand.u32 %s90, 1
        %s162 = smul.addr %s161, 224
        %s163 = scalar_lea.vmem [#allocation2], %s162
        %p164 = scmp.lt.s32.totalorder %s20, 1
        %s165 = scalar_select %p164, %s20, 1
        %s166 = smul.addr %s165, 48
        %s167 = smul.addr %s166, 8
        %s168 = scalar_lea.vmem %s0, %s167
        %p169 = scmp.lt.s32.totalorder %s21, 0
        %s170 = scalar_select %p169, %s21, 0
        %s171 = smul.addr %s170, 8
        %s172 = scalar_lea.vmem %s1, %s171
        %v173 = vld [vmem:[%s168] sm:$0xff]
        %v174 = vld [vmem:[%s168 + $0x8] sm:$0xff]
        %v175 = vld [vmem:[%s168 + $0x10] sm:$0x3]
        %v176 = vld [vmem:[%s168 + $0x18] sm:$0xff]
        %v177 = vld [vmem:[%s168 + $0x20] sm:$0xff]
        %v178 = vld [vmem:[%s168 + $0x28] sm:$0x3]
        %v179 = vld [vmem:[%s168 + $0x30] sm:$0xff]
        %v180 = vld [vmem:[%s168 + $0x38] sm:$0xff]
        %v181 = vld [vmem:[%s168 + $0x40] sm:$0x3]
        %v182 = vld [vmem:[%s168 + $0x48] sm:$0xff]
        %v183 = vld [vmem:[%s168 + $0x50] sm:$0xff]
        %v184 = vld [vmem:[%s168 + $0x58] sm:$0x3]
        %v185 = vld [vmem:[%s168 + $0x60] sm:$0xff]
        %v186 = vld [vmem:[%s168 + $0x68] sm:$0xff]
        %v187 = vld [vmem:[%s168 + $0x70] sm:$0x3]
        %v188 = vld [vmem:[%s168 + $0x78] sm:$0xff]
        %v189 = vld [vmem:[%s168 + $0x80] sm:$0xff]
        %v190 = vld [vmem:[%s168 + $0x88] sm:$0x3]
        %v191 = vld [vmem:[%s168 + $0x90] sm:$0xff]
        %v192 = vld [vmem:[%s168 + $0x98] sm:$0xff]
        %v193 = vld [vmem:[%s168 + $0xa0] sm:$0x3]
        %v194 = vld [vmem:[%s168 + $0xa8] sm:$0xff]
        %v195 = vld [vmem:[%s168 + $0xb0] sm:$0xff]
        %v196 = vld [vmem:[%s168 + $0xb8] sm:$0x3]
        %v197 = vld [vmem:[%s168 + $0xc0] sm:$0xff]
        %v198 = vld [vmem:[%s168 + $0xc8] sm:$0xff]
        %v199 = vld [vmem:[%s168 + $0xd0] sm:$0x3]
        %v200 = vld [vmem:[%s168 + $0xd8] sm:$0xff]
        %v201 = vld [vmem:[%s168 + $0xe0] sm:$0xff]
        %v202 = vld [vmem:[%s168 + $0xe8] sm:$0x3]
        %v203 = vld [vmem:[%s168 + $0xf0] sm:$0xff]
        %v204 = vld [vmem:[%s168 + $0xf8] sm:$0xff]
        %v205 = vld [vmem:[%s168 + $0x100] sm:$0x3]
        %v206 = vld [vmem:[%s168 + $0x108] sm:$0xff]
        %v207 = vld [vmem:[%s168 + $0x110] sm:$0xff]
        %v208 = vld [vmem:[%s168 + $0x118] sm:$0x3]
        %v209 = vld [vmem:[%s168 + $0x120] sm:$0xff]
        %v210 = vld [vmem:[%s168 + $0x128] sm:$0xff]
        %v211 = vld [vmem:[%s168 + $0x130] sm:$0x3]
        %v212 = vld [vmem:[%s168 + $0x138] sm:$0xff]
        %v213 = vld [vmem:[%s168 + $0x140] sm:$0xff]
        %v214 = vld [vmem:[%s168 + $0x148] sm:$0x3]
        %v215 = vld [vmem:[%s168 + $0x150] sm:$0xff]
        %v216 = vld [vmem:[%s168 + $0x158] sm:$0xff]
        %v217 = vld [vmem:[%s168 + $0x160] sm:$0x3]
        %v218 = vld [vmem:[%s168 + $0x168] sm:$0xff]
        %v219 = vld [vmem:[%s168 + $0x170] sm:$0xff]
        %v220 = vld [vmem:[%s168 + $0x178] sm:$0x3]
        %v221 = vld [vmem:[%s172] sm:$0xff]
        %v222 = vld [vmem:[%s172 + $0x8] sm:$0xff]
        %v223 = vld [vmem:[%s172 + $0x10] sm:$0xff]
        %v224 = vld [vmem:[%s172 + $0x18] sm:$0xff]
        %v225 = vld [vmem:[%s172 + $0x20] sm:$0xff]
        %v226 = vld [vmem:[%s172 + $0x28] sm:$0xff]
        %v227 = vld [vmem:[%s172 + $0x30] sm:$0xff]
        %v228 = vld [vmem:[%s172 + $0x38] sm:$0xff]
        %v229 = vld [vmem:[%s172 + $0x40] sm:$0xff]
        %vm230 = vcmask 64512
        %v232 = vsel %vm230, %v176, 0
        %v235 = vsel %vm230, %v177, 0
        %v238 = vsel %vm230, %v179, 0
        %v241 = vsel %vm230, %v180, 0
        %v244 = vsel %vm230, %v182, 0
        %v247 = vsel %vm230, %v183, 0
        %v250 = vsel %vm230, %v185, 0
        %v253 = vsel %vm230, %v186, 0
        %v256 = vsel %vm230, %v188, 0
        %v259 = vsel %vm230, %v189, 0
        %v262 = vsel %vm230, %v191, 0
        %v265 = vsel %vm230, %v192, 0
        %v268 = vsel %vm230, %v194, 0
        %v271 = vsel %vm230, %v195, 0
        %v274 = vsel %vm230, %v197, 0
        %v277 = vsel %vm230, %v198, 0
        %v280 = vsel %vm230, %v200, 0
        %v283 = vsel %vm230, %v201, 0
        %v286 = vsel %vm230, %v203, 0
        %v289 = vsel %vm230, %v204, 0
        %v292 = vsel %vm230, %v206, 0
        %v295 = vsel %vm230, %v207, 0
        %v298 = vsel %vm230, %v209, 0
        %v301 = vsel %vm230, %v210, 0
        %v304 = vsel %vm230, %v212, 0
        %v307 = vsel %vm230, %v213, 0
        %v310 = vsel %vm230, %v215, 0
        %v313 = vsel %vm230, %v216, 0
        %315 = vmatpush.msra.mxu0 0.0
        %316 = vmatpush.msra.mxu0 0.0
        %317 = vmatpush.msra.mxu0 0.0
        %318 = vmatpush.msra.mxu0 0.0
        %319 = vmatpush.msra.mxu0 0.0
        %320 = vmatpush.msra.mxu0 0.0
        %321 = vmatpush.msra.mxu0 0.0
        %322 = vmatpush.msra.mxu0 0.0
        %323 = vmatpush.msra.mxu0 0.0
        %324 = vmatpush.msra.mxu0 0.0
        %325 = vmatpush.msra.mxu0 0.0
        %326 = vmatpush.msra.mxu0 0.0
        %327 = vmatpush.msra.mxu0 0.0
        %328 = vmatpush.msra.mxu0 0.0
        %329 = vmatpush.msra.mxu0 0.0
        %330 = vmatpush.msra.mxu0 %v224
        %331 = vmatmul.f32.gmra.mxu0 %v232
        %v332 = vpop.f32.mrf.mxu0
        %v333 = vadd.f32 0.0, %v332
        %334 = vmatmul.f32.gmra.mxu0 %v235
        %v335 = vpop.f32.mrf.mxu0
        %v336 = vadd.f32 0.0, %v335
        %337 = vmatmul.f32.gmra.mxu0 %v238
        %v338 = vpop.f32.mrf.mxu0
        %v339 = vadd.f32 0.0, %v338
        %340 = vmatmul.f32.gmra.mxu0 %v241
        %v341 = vpop.f32.mrf.mxu0
        %v342 = vadd.f32 0.0, %v341
        %343 = vmatmul.f32.gmra.mxu0 %v244
        %v344 = vpop.f32.mrf.mxu0
        %v345 = vadd.f32 0.0, %v344
        %346 = vmatmul.f32.gmra.mxu0 %v247
        %v347 = vpop.f32.mrf.mxu0
        %v348 = vadd.f32 0.0, %v347
        %349 = vmatmul.f32.gmra.mxu0 %v250
        %v350 = vpop.f32.mrf.mxu0
        %v351 = vadd.f32 0.0, %v350
        %352 = vmatmul.f32.gmra.mxu0 %v253
        %v353 = vpop.f32.mrf.mxu0
        %v354 = vadd.f32 0.0, %v353
        %355 = vmatmul.f32.gmra.mxu0 %v256
        %v356 = vpop.f32.mrf.mxu0
        %v357 = vadd.f32 0.0, %v356
        %358 = vmatmul.f32.gmra.mxu0 %v259
        %v359 = vpop.f32.mrf.mxu0
        %v360 = vadd.f32 0.0, %v359
        %361 = vmatmul.f32.gmra.mxu0 %v262
        %v362 = vpop.f32.mrf.mxu0
        %v363 = vadd.f32 0.0, %v362
        %364 = vmatmul.f32.gmra.mxu0 %v265
        %v365 = vpop.f32.mrf.mxu0
        %v366 = vadd.f32 0.0, %v365
        %367 = vmatmul.f32.gmra.mxu0 %v268
        %v368 = vpop.f32.mrf.mxu0
        %v369 = vadd.f32 0.0, %v368
        %370 = vmatmul.f32.gmra.mxu0 %v271
        %v371 = vpop.f32.mrf.mxu0
        %v372 = vadd.f32 0.0, %v371
        %373 = vmatmul.f32.gmra.mxu0 %v274
        %v374 = vpop.f32.mrf.mxu0
        %v375 = vadd.f32 0.0, %v374
        %376 = vmatmul.f32.gmra.mxu0 %v277
        %v377 = vpop.f32.mrf.mxu0
        %v378 = vadd.f32 0.0, %v377
        %379 = vmatmul.f32.gmra.mxu0 %v280
        %v380 = vpop.f32.mrf.mxu0
        %v381 = vadd.f32 0.0, %v380
        %382 = vmatmul.f32.gmra.mxu0 %v283
        %v383 = vpop.f32.mrf.mxu0
        %v384 = vadd.f32 0.0, %v383
        %385 = vmatmul.f32.gmra.mxu0 %v286
        %v386 = vpop.f32.mrf.mxu0
        %v387 = vadd.f32 0.0, %v386
        %388 = vmatmul.f32.gmra.mxu0 %v289
        %v389 = vpop.f32.mrf.mxu0
        %v390 = vadd.f32 0.0, %v389
        %391 = vmatmul.f32.gmra.mxu0 %v292
        %v392 = vpop.f32.mrf.mxu0
        %v393 = vadd.f32 0.0, %v392
        %394 = vmatmul.f32.gmra.mxu0 %v295
        %v395 = vpop.f32.mrf.mxu0
        %v396 = vadd.f32 0.0, %v395
        %397 = vmatmul.f32.gmra.mxu0 %v298
        %v398 = vpop.f32.mrf.mxu0
        %v399 = vadd.f32 0.0, %v398
        %400 = vmatmul.f32.gmra.mxu0 %v301
        %v401 = vpop.f32.mrf.mxu0
        %v402 = vadd.f32 0.0, %v401
        %403 = vmatmul.f32.gmra.mxu0 %v304
        %v404 = vpop.f32.mrf.mxu0
        %v405 = vadd.f32 0.0, %v404
        %406 = vmatmul.f32.gmra.mxu0 %v307
        %v407 = vpop.f32.mrf.mxu0
        %v408 = vadd.f32 0.0, %v407
        %409 = vmatmul.f32.gmra.mxu0 %v310
        %v410 = vpop.f32.mrf.mxu0
        %v411 = vadd.f32 0.0, %v410
        %412 = vmatmul.f32.gmra.mxu0 %v313
        %v413 = vpop.f32.mrf.mxu0
        %v414 = vadd.f32 0.0, %v413
        %415 = vdwg.mxu0
        %v417 = vsel %vm230, %v173, 0
        %v420 = vsel %vm230, %v174, 0
        %422 = vmatpush.msra.mxu0 0.0
        %423 = vmatpush.msra.mxu0 0.0
        %424 = vmatpush.msra.mxu0 0.0
        %425 = vmatpush.msra.mxu0 0.0
        %426 = vmatpush.msra.mxu0 0.0
        %427 = vmatpush.msra.mxu0 0.0
        %428 = vmatpush.msra.mxu0 0.0
        %429 = vmatpush.msra.mxu0 0.0
        %430 = vmatpush.msra.mxu0 0.0
        %431 = vmatpush.msra.mxu0 0.0
        %432 = vmatpush.msra.mxu0 0.0
        %433 = vmatpush.msra.mxu0 0.0
        %434 = vmatpush.msra.mxu0 0.0
        %435 = vmatpush.msra.mxu0 0.0
        %436 = vmatpush.msra.mxu0 0.0
        %437 = vmatpush.msra.mxu0 %v221
        %438 = vmatmul.f32.gmra.mxu0 %v417
        %v439 = vpop.f32.mrf.mxu0
        %v440 = vadd.f32 %v333, %v439
        %441 = vmatmul.f32.gmra.mxu0 %v420
        %v442 = vpop.f32.mrf.mxu0
        %v443 = vadd.f32 %v336, %v442
        %444 = vmatmul.f32.gmra.mxu0 %v232
        %v445 = vpop.f32.mrf.mxu0
        %v446 = vadd.f32 %v339, %v445
        %447 = vmatmul.f32.gmra.mxu0 %v235
        %v448 = vpop.f32.mrf.mxu0
        %v449 = vadd.f32 %v342, %v448
        %450 = vmatmul.f32.gmra.mxu0 %v238
        %v451 = vpop.f32.mrf.mxu0
        %v452 = vadd.f32 %v345, %v451
        %453 = vmatmul.f32.gmra.mxu0 %v241
        %v454 = vpop.f32.mrf.mxu0
        %v455 = vadd.f32 %v348, %v454
        %456 = vmatmul.f32.gmra.mxu0 %v244
        %v457 = vpop.f32.mrf.mxu0
        %v458 = vadd.f32 %v351, %v457
        %459 = vmatmul.f32.gmra.mxu0 %v247
        %v460 = vpop.f32.mrf.mxu0
        %v461 = vadd.f32 %v354, %v460
        %462 = vmatmul.f32.gmra.mxu0 %v250
        %v463 = vpop.f32.mrf.mxu0
        %v464 = vadd.f32 %v357, %v463
        %465 = vmatmul.f32.gmra.mxu0 %v253
        %v466 = vpop.f32.mrf.mxu0
        %v467 = vadd.f32 %v360, %v466
        %468 = vmatmul.f32.gmra.mxu0 %v256
        %v469 = vpop.f32.mrf.mxu0
        %v470 = vadd.f32 %v363, %v469
        %471 = vmatmul.f32.gmra.mxu0 %v259
        %v472 = vpop.f32.mrf.mxu0
        %v473 = vadd.f32 %v366, %v472
        %474 = vmatmul.f32.gmra.mxu0 %v262
        %v475 = vpop.f32.mrf.mxu0
        %v476 = vadd.f32 %v369, %v475
        %477 = vmatmul.f32.gmra.mxu0 %v265
        %v478 = vpop.f32.mrf.mxu0
        %v479 = vadd.f32 %v372, %v478
        %480 = vmatmul.f32.gmra.mxu0 %v268
        %v481 = vpop.f32.mrf.mxu0
        %v482 = vadd.f32 %v375, %v481
        %483 = vmatmul.f32.gmra.mxu0 %v271
        %v484 = vpop.f32.mrf.mxu0
        %v485 = vadd.f32 %v378, %v484
        %486 = vmatmul.f32.gmra.mxu0 %v274
        %v487 = vpop.f32.mrf.mxu0
        %v488 = vadd.f32 %v381, %v487
        %489 = vmatmul.f32.gmra.mxu0 %v277
        %v490 = vpop.f32.mrf.mxu0
        %v491 = vadd.f32 %v384, %v490
        %492 = vmatmul.f32.gmra.mxu0 %v280
        %v493 = vpop.f32.mrf.mxu0
        %v494 = vadd.f32 %v387, %v493
        %495 = vmatmul.f32.gmra.mxu0 %v283
        %v496 = vpop.f32.mrf.mxu0
        %v497 = vadd.f32 %v390, %v496
        %498 = vmatmul.f32.gmra.mxu0 %v286
        %v499 = vpop.f32.mrf.mxu0
        %v500 = vadd.f32 %v393, %v499
        %501 = vmatmul.f32.gmra.mxu0 %v289
        %v502 = vpop.f32.mrf.mxu0
        %v503 = vadd.f32 %v396, %v502
        %504 = vmatmul.f32.gmra.mxu0 %v292
        %v505 = vpop.f32.mrf.mxu0
        %v506 = vadd.f32 %v399, %v505
        %507 = vmatmul.f32.gmra.mxu0 %v295
        %v508 = vpop.f32.mrf.mxu0
        %v509 = vadd.f32 %v402, %v508
        %510 = vmatmul.f32.gmra.mxu0 %v298
        %v511 = vpop.f32.mrf.mxu0
        %v512 = vadd.f32 %v405, %v511
        %513 = vmatmul.f32.gmra.mxu0 %v301
        %v514 = vpop.f32.mrf.mxu0
        %v515 = vadd.f32 %v408, %v514
        %516 = vmatmul.f32.gmra.mxu0 %v304
        %v517 = vpop.f32.mrf.mxu0
        %v518 = vadd.f32 %v411, %v517
        %519 = vmatmul.f32.gmra.mxu0 %v307
        %v520 = vpop.f32.mrf.mxu0
        %v521 = vadd.f32 %v414, %v520
        %522 = vdwg.mxu0
        %v524 = vsel %vm230, %v218, 0
        %v527 = vsel %vm230, %v219, 0
        %529 = vmatpush.msra.mxu0 0.0
        %530 = vmatpush.msra.mxu0 0.0
        %531 = vmatpush.msra.mxu0 0.0
        %532 = vmatpush.msra.mxu0 0.0
        %533 = vmatpush.msra.mxu0 0.0
        %534 = vmatpush.msra.mxu0 0.0
        %535 = vmatpush.msra.mxu0 0.0
        %536 = vmatpush.msra.mxu0 0.0
        %537 = vmatpush.msra.mxu0 0.0
        %538 = vmatpush.msra.mxu0 0.0
        %539 = vmatpush.msra.mxu0 0.0
        %540 = vmatpush.msra.mxu0 0.0
        %541 = vmatpush.msra.mxu0 0.0
        %542 = vmatpush.msra.mxu0 0.0
        %543 = vmatpush.msra.mxu0 0.0
        %544 = vmatpush.msra.mxu0 %v227
        %545 = vmatmul.f32.gmra.mxu0 %v238
        %v546 = vpop.f32.mrf.mxu0
        %v547 = vadd.f32 0.0, %v546
        %548 = vmatmul.f32.gmra.mxu0 %v241
        %v549 = vpop.f32.mrf.mxu0
        %v550 = vadd.f32 0.0, %v549
        %551 = vmatmul.f32.gmra.mxu0 %v244
        %v552 = vpop.f32.mrf.mxu0
        %v553 = vadd.f32 0.0, %v552
        %554 = vmatmul.f32.gmra.mxu0 %v247
        %v555 = vpop.f32.mrf.mxu0
        %v556 = vadd.f32 0.0, %v555
        %557 = vmatmul.f32.gmra.mxu0 %v250
        %v558 = vpop.f32.mrf.mxu0
        %v559 = vadd.f32 0.0, %v558
        %560 = vmatmul.f32.gmra.mxu0 %v253
        %v561 = vpop.f32.mrf.mxu0
        %v562 = vadd.f32 0.0, %v561
        %563 = vmatmul.f32.gmra.mxu0 %v256
        %v564 = vpop.f32.mrf.mxu0
        %v565 = vadd.f32 0.0, %v564
        %566 = vmatmul.f32.gmra.mxu0 %v259
        %v567 = vpop.f32.mrf.mxu0
        %v568 = vadd.f32 0.0, %v567
        %569 = vmatmul.f32.gmra.mxu0 %v262
        %v570 = vpop.f32.mrf.mxu0
        %v571 = vadd.f32 0.0, %v570
        %572 = vmatmul.f32.gmra.mxu0 %v265
        %v573 = vpop.f32.mrf.mxu0
        %v574 = vadd.f32 0.0, %v573
        %575 = vmatmul.f32.gmra.mxu0 %v268
        %v576 = vpop.f32.mrf.mxu0
        %v577 = vadd.f32 0.0, %v576
        %578 = vmatmul.f32.gmra.mxu0 %v271
        %v579 = vpop.f32.mrf.mxu0
        %v580 = vadd.f32 0.0, %v579
        %581 = vmatmul.f32.gmra.mxu0 %v274
        %v582 = vpop.f32.mrf.mxu0
        %v583 = vadd.f32 0.0, %v582
        %584 = vmatmul.f32.gmra.mxu0 %v277
        %v585 = vpop.f32.mrf.mxu0
        %v586 = vadd.f32 0.0, %v585
        %587 = vmatmul.f32.gmra.mxu0 %v280
        %v588 = vpop.f32.mrf.mxu0
        %v589 = vadd.f32 0.0, %v588
        %590 = vmatmul.f32.gmra.mxu0 %v283
        %v591 = vpop.f32.mrf.mxu0
        %v592 = vadd.f32 0.0, %v591
        %593 = vmatmul.f32.gmra.mxu0 %v286
        %v594 = vpop.f32.mrf.mxu0
        %v595 = vadd.f32 0.0, %v594
        %596 = vmatmul.f32.gmra.mxu0 %v289
        %v597 = vpop.f32.mrf.mxu0
        %v598 = vadd.f32 0.0, %v597
        %599 = vmatmul.f32.gmra.mxu0 %v292
        %v600 = vpop.f32.mrf.mxu0
        %v601 = vadd.f32 0.0, %v600
        %602 = vmatmul.f32.gmra.mxu0 %v295
        %v603 = vpop.f32.mrf.mxu0
        %v604 = vadd.f32 0.0, %v603
        %605 = vmatmul.f32.gmra.mxu0 %v298
        %v606 = vpop.f32.mrf.mxu0
        %v607 = vadd.f32 0.0, %v606
        %608 = vmatmul.f32.gmra.mxu0 %v301
        %v609 = vpop.f32.mrf.mxu0
        %v610 = vadd.f32 0.0, %v609
        %611 = vmatmul.f32.gmra.mxu0 %v304
        %v612 = vpop.f32.mrf.mxu0
        %v613 = vadd.f32 0.0, %v612
        %614 = vmatmul.f32.gmra.mxu0 %v307
        %v615 = vpop.f32.mrf.mxu0
        %v616 = vadd.f32 0.0, %v615
        %617 = vmatmul.f32.gmra.mxu0 %v310
        %v618 = vpop.f32.mrf.mxu0
        %v619 = vadd.f32 0.0, %v618
        %620 = vmatmul.f32.gmra.mxu0 %v313
        %v621 = vpop.f32.mrf.mxu0
        %v622 = vadd.f32 0.0, %v621
        %623 = vmatmul.f32.gmra.mxu0 %v524
        %v624 = vpop.f32.mrf.mxu0
        %v625 = vadd.f32 0.0, %v624
        %626 = vmatmul.f32.gmra.mxu0 %v527
        %v627 = vpop.f32.mrf.mxu0
        %v628 = vadd.f32 0.0, %v627
        %629 = vdwg.mxu0
        %v630 = vadd.f32 %v440, %v547
        %v631 = vadd.f32 %v443, %v550
        %v632 = vadd.f32 %v446, %v553
        %v633 = vadd.f32 %v449, %v556
        %v634 = vadd.f32 %v452, %v559
        %v635 = vadd.f32 %v455, %v562
        %v636 = vadd.f32 %v458, %v565
        %v637 = vadd.f32 %v461, %v568
        %v638 = vadd.f32 %v464, %v571
        %v639 = vadd.f32 %v467, %v574
        %v640 = vadd.f32 %v470, %v577
        %v641 = vadd.f32 %v473, %v580
        %v642 = vadd.f32 %v476, %v583
        %v643 = vadd.f32 %v479, %v586
        %v644 = vadd.f32 %v482, %v589
        %v645 = vadd.f32 %v485, %v592
        %v646 = vadd.f32 %v488, %v595
        %v647 = vadd.f32 %v491, %v598
        %v648 = vadd.f32 %v494, %v601
        %v649 = vadd.f32 %v497, %v604
        %v650 = vadd.f32 %v500, %v607
        %v651 = vadd.f32 %v503, %v610
        %v652 = vadd.f32 %v506, %v613
        %v653 = vadd.f32 %v509, %v616
        %v654 = vadd.f32 %v512, %v619
        %v655 = vadd.f32 %v515, %v622
        %v656 = vadd.f32 %v518, %v625
        %v657 = vadd.f32 %v521, %v628
        %vm672 = vcmask 1046528
        %v673 = vrot.slane %v173, 1
        %v674 = vrot.slane %v174, 1
        %v675 = vsel %vm672, %v673, %v674
        %v676 = vrot.slane %v175, 1
        %v677 = vsel %vm672, %v674, %v676
        %v678 = vrot.slane %v176, 1
        %v679 = vrot.slane %v177, 1
        %v680 = vsel %vm672, %v678, %v679
        %v681 = vrot.slane %v178, 1
        %v682 = vsel %vm672, %v679, %v681
        %v683 = vrot.slane %v179, 1
        %v684 = vrot.slane %v180, 1
        %v685 = vsel %vm672, %v683, %v684
        %v686 = vrot.slane %v181, 1
        %v687 = vsel %vm672, %v684, %v686
        %v688 = vrot.slane %v182, 1
        %v689 = vrot.slane %v183, 1
        %v690 = vsel %vm672, %v688, %v689
        %v691 = vrot.slane %v184, 1
        %v692 = vsel %vm672, %v689, %v691
        %v693 = vrot.slane %v185, 1
        %v694 = vrot.slane %v186, 1
        %v695 = vsel %vm672, %v693, %v694
        %v696 = vrot.slane %v187, 1
        %v697 = vsel %vm672, %v694, %v696
        %v698 = vrot.slane %v188, 1
        %v699 = vrot.slane %v189, 1
        %v700 = vsel %vm672, %v698, %v699
        %v701 = vrot.slane %v190, 1
        %v702 = vsel %vm672, %v699, %v701
        %v703 = vrot.slane %v191, 1
        %v704 = vrot.slane %v192, 1
        %v705 = vsel %vm672, %v703, %v704
        %v706 = vrot.slane %v193, 1
        %v707 = vsel %vm672, %v704, %v706
        %v708 = vrot.slane %v194, 1
        %v709 = vrot.slane %v195, 1
        %v710 = vsel %vm672, %v708, %v709
        %v711 = vrot.slane %v196, 1
        %v712 = vsel %vm672, %v709, %v711
        %v713 = vrot.slane %v197, 1
        %v714 = vrot.slane %v198, 1
        %v715 = vsel %vm672, %v713, %v714
        %v716 = vrot.slane %v199, 1
        %v717 = vsel %vm672, %v714, %v716
        %v718 = vrot.slane %v200, 1
        %v719 = vrot.slane %v201, 1
        %v720 = vsel %vm672, %v718, %v719
        %v721 = vrot.slane %v202, 1
        %v722 = vsel %vm672, %v719, %v721
        %v723 = vrot.slane %v203, 1
        %v724 = vrot.slane %v204, 1
        %v725 = vsel %vm672, %v723, %v724
        %v726 = vrot.slane %v205, 1
        %v727 = vsel %vm672, %v724, %v726
        %v728 = vrot.slane %v206, 1
        %v729 = vrot.slane %v207, 1
        %v730 = vsel %vm672, %v728, %v729
        %v731 = vrot.slane %v208, 1
        %v732 = vsel %vm672, %v729, %v731
        %v733 = vrot.slane %v209, 1
        %v734 = vrot.slane %v210, 1
        %v735 = vsel %vm672, %v733, %v734
        %v736 = vrot.slane %v211, 1
        %v737 = vsel %vm672, %v734, %v736
        %v738 = vrot.slane %v212, 1
        %v739 = vrot.slane %v213, 1
        %v740 = vsel %vm672, %v738, %v739
        %v741 = vrot.slane %v214, 1
        %v742 = vsel %vm672, %v739, %v741
        %v743 = vsel %vm230, %v675, 0
        %v745 = vsel %vm230, %v677, 0
        %v747 = vsel %vm230, %v680, 0
        %v749 = vsel %vm230, %v682, 0
        %v751 = vsel %vm230, %v685, 0
        %v753 = vsel %vm230, %v687, 0
        %v755 = vsel %vm230, %v690, 0
        %v757 = vsel %vm230, %v692, 0
        %v759 = vsel %vm230, %v695, 0
        %v761 = vsel %vm230, %v697, 0
        %v763 = vsel %vm230, %v700, 0
        %v765 = vsel %vm230, %v702, 0
        %v767 = vsel %vm230, %v705, 0
        %v769 = vsel %vm230, %v707, 0
        %v771 = vsel %vm230, %v710, 0
        %v773 = vsel %vm230, %v712, 0
        %v775 = vsel %vm230, %v715, 0
        %v777 = vsel %vm230, %v717, 0
        %v779 = vsel %vm230, %v720, 0
        %v781 = vsel %vm230, %v722, 0
        %v783 = vsel %vm230, %v725, 0
        %v785 = vsel %vm230, %v727, 0
        %v787 = vsel %vm230, %v730, 0
        %v789 = vsel %vm230, %v732, 0
        %v791 = vsel %vm230, %v735, 0
        %v793 = vsel %vm230, %v737, 0
        %v795 = vsel %vm230, %v740, 0
        %v797 = vsel %vm230, %v742, 0
        %799 = vmatpush.msra.mxu0 0.0
        %800 = vmatpush.msra.mxu0 0.0
        %801 = vmatpush.msra.mxu0 0.0
        %802 = vmatpush.msra.mxu0 0.0
        %803 = vmatpush.msra.mxu0 0.0
        %804 = vmatpush.msra.mxu0 0.0
        %805 = vmatpush.msra.mxu0 0.0
        %806 = vmatpush.msra.mxu0 0.0
        %807 = vmatpush.msra.mxu0 0.0
        %808 = vmatpush.msra.mxu0 0.0
        %809 = vmatpush.msra.mxu0 0.0
        %810 = vmatpush.msra.mxu0 0.0
        %811 = vmatpush.msra.mxu0 0.0
        %812 = vmatpush.msra.mxu0 0.0
        %813 = vmatpush.msra.mxu0 0.0
        %814 = vmatpush.msra.mxu0 %v222
        %815 = vmatmul.f32.gmra.mxu0 %v743
        %v816 = vpop.f32.mrf.mxu0
        %v817 = vadd.f32 0.0, %v816
        %818 = vmatmul.f32.gmra.mxu0 %v745
        %v819 = vpop.f32.mrf.mxu0
        %v820 = vadd.f32 0.0, %v819
        %821 = vmatmul.f32.gmra.mxu0 %v747
        %v822 = vpop.f32.mrf.mxu0
        %v823 = vadd.f32 0.0, %v822
        %824 = vmatmul.f32.gmra.mxu0 %v749
        %v825 = vpop.f32.mrf.mxu0
        %v826 = vadd.f32 0.0, %v825
        %827 = vmatmul.f32.gmra.mxu0 %v751
        %v828 = vpop.f32.mrf.mxu0
        %v829 = vadd.f32 0.0, %v828
        %830 = vmatmul.f32.gmra.mxu0 %v753
        %v831 = vpop.f32.mrf.mxu0
        %v832 = vadd.f32 0.0, %v831
        %833 = vmatmul.f32.gmra.mxu0 %v755
        %v834 = vpop.f32.mrf.mxu0
        %v835 = vadd.f32 0.0, %v834
        %836 = vmatmul.f32.gmra.mxu0 %v757
        %v837 = vpop.f32.mrf.mxu0
        %v838 = vadd.f32 0.0, %v837
        %839 = vmatmul.f32.gmra.mxu0 %v759
        %v840 = vpop.f32.mrf.mxu0
        %v841 = vadd.f32 0.0, %v840
        %842 = vmatmul.f32.gmra.mxu0 %v761
        %v843 = vpop.f32.mrf.mxu0
        %v844 = vadd.f32 0.0, %v843
        %845 = vmatmul.f32.gmra.mxu0 %v763
        %v846 = vpop.f32.mrf.mxu0
        %v847 = vadd.f32 0.0, %v846
        %848 = vmatmul.f32.gmra.mxu0 %v765
        %v849 = vpop.f32.mrf.mxu0
        %v850 = vadd.f32 0.0, %v849
        %851 = vmatmul.f32.gmra.mxu0 %v767
        %v852 = vpop.f32.mrf.mxu0
        %v853 = vadd.f32 0.0, %v852
        %854 = vmatmul.f32.gmra.mxu0 %v769
        %v855 = vpop.f32.mrf.mxu0
        %v856 = vadd.f32 0.0, %v855
        %857 = vmatmul.f32.gmra.mxu0 %v771
        %v858 = vpop.f32.mrf.mxu0
        %v859 = vadd.f32 0.0, %v858
        %860 = vmatmul.f32.gmra.mxu0 %v773
        %v861 = vpop.f32.mrf.mxu0
        %v862 = vadd.f32 0.0, %v861
        %863 = vmatmul.f32.gmra.mxu0 %v775
        %v864 = vpop.f32.mrf.mxu0
        %v865 = vadd.f32 0.0, %v864
        %866 = vmatmul.f32.gmra.mxu0 %v777
        %v867 = vpop.f32.mrf.mxu0
        %v868 = vadd.f32 0.0, %v867
        %869 = vmatmul.f32.gmra.mxu0 %v779
        %v870 = vpop.f32.mrf.mxu0
        %v871 = vadd.f32 0.0, %v870
        %872 = vmatmul.f32.gmra.mxu0 %v781
        %v873 = vpop.f32.mrf.mxu0
        %v874 = vadd.f32 0.0, %v873
        %875 = vmatmul.f32.gmra.mxu0 %v783
        %v876 = vpop.f32.mrf.mxu0
        %v877 = vadd.f32 0.0, %v876
        %878 = vmatmul.f32.gmra.mxu0 %v785
        %v879 = vpop.f32.mrf.mxu0
        %v880 = vadd.f32 0.0, %v879
        %881 = vmatmul.f32.gmra.mxu0 %v787
        %v882 = vpop.f32.mrf.mxu0
        %v883 = vadd.f32 0.0, %v882
        %884 = vmatmul.f32.gmra.mxu0 %v789
        %v885 = vpop.f32.mrf.mxu0
        %v886 = vadd.f32 0.0, %v885
        %887 = vmatmul.f32.gmra.mxu0 %v791
        %v888 = vpop.f32.mrf.mxu0
        %v889 = vadd.f32 0.0, %v888
        %890 = vmatmul.f32.gmra.mxu0 %v793
        %v891 = vpop.f32.mrf.mxu0
        %v892 = vadd.f32 0.0, %v891
        %893 = vmatmul.f32.gmra.mxu0 %v795
        %v894 = vpop.f32.mrf.mxu0
        %v895 = vadd.f32 0.0, %v894
        %896 = vmatmul.f32.gmra.mxu0 %v797
        %v897 = vpop.f32.mrf.mxu0
        %v898 = vadd.f32 0.0, %v897
        %899 = vdwg.mxu0
        %v900 = vadd.f32 %v630, %v817
        %v901 = vadd.f32 %v631, %v820
        %v902 = vadd.f32 %v632, %v823
        %v903 = vadd.f32 %v633, %v826
        %v904 = vadd.f32 %v634, %v829
        %v905 = vadd.f32 %v635, %v832
        %v906 = vadd.f32 %v636, %v835
        %v907 = vadd.f32 %v637, %v838
        %v908 = vadd.f32 %v638, %v841
        %v909 = vadd.f32 %v639, %v844
        %v910 = vadd.f32 %v640, %v847
        %v911 = vadd.f32 %v641, %v850
        %v912 = vadd.f32 %v642, %v853
        %v913 = vadd.f32 %v643, %v856
        %v914 = vadd.f32 %v644, %v859
        %v915 = vadd.f32 %v645, %v862
        %v916 = vadd.f32 %v646, %v865
        %v917 = vadd.f32 %v647, %v868
        %v918 = vadd.f32 %v648, %v871
        %v919 = vadd.f32 %v649, %v874
        %v920 = vadd.f32 %v650, %v877
        %v921 = vadd.f32 %v651, %v880
        %v922 = vadd.f32 %v652, %v883
        %v923 = vadd.f32 %v653, %v886
        %v924 = vadd.f32 %v654, %v889
        %v925 = vadd.f32 %v655, %v892
        %v926 = vadd.f32 %v656, %v895
        %v927 = vadd.f32 %v657, %v898
        %v929 = vrot.slane %v215, 1
        %v930 = vrot.slane %v216, 1
        %v931 = vsel %vm672, %v929, %v930
        %v932 = vrot.slane %v217, 1
        %v933 = vsel %vm672, %v930, %v932
        %v934 = vsel %vm230, %v931, 0
        %v936 = vsel %vm230, %v933, 0
        %938 = vmatpush.msra.mxu0 0.0
        %939 = vmatpush.msra.mxu0 0.0
        %940 = vmatpush.msra.mxu0 0.0
        %941 = vmatpush.msra.mxu0 0.0
        %942 = vmatpush.msra.mxu0 0.0
        %943 = vmatpush.msra.mxu0 0.0
        %944 = vmatpush.msra.mxu0 0.0
        %945 = vmatpush.msra.mxu0 0.0
        %946 = vmatpush.msra.mxu0 0.0
        %947 = vmatpush.msra.mxu0 0.0
        %948 = vmatpush.msra.mxu0 0.0
        %949 = vmatpush.msra.mxu0 0.0
        %950 = vmatpush.msra.mxu0 0.0
        %951 = vmatpush.msra.mxu0 0.0
        %952 = vmatpush.msra.mxu0 0.0
        %953 = vmatpush.msra.mxu0 %v225
        %954 = vmatmul.f32.gmra.mxu0 %v747
        %v955 = vpop.f32.mrf.mxu0
        %v956 = vadd.f32 0.0, %v955
        %957 = vmatmul.f32.gmra.mxu0 %v749
        %v958 = vpop.f32.mrf.mxu0
        %v959 = vadd.f32 0.0, %v958
        %960 = vmatmul.f32.gmra.mxu0 %v751
        %v961 = vpop.f32.mrf.mxu0
        %v962 = vadd.f32 0.0, %v961
        %963 = vmatmul.f32.gmra.mxu0 %v753
        %v964 = vpop.f32.mrf.mxu0
        %v965 = vadd.f32 0.0, %v964
        %966 = vmatmul.f32.gmra.mxu0 %v755
        %v967 = vpop.f32.mrf.mxu0
        %v968 = vadd.f32 0.0, %v967
        %969 = vmatmul.f32.gmra.mxu0 %v757
        %v970 = vpop.f32.mrf.mxu0
        %v971 = vadd.f32 0.0, %v970
        %972 = vmatmul.f32.gmra.mxu0 %v759
        %v973 = vpop.f32.mrf.mxu0
        %v974 = vadd.f32 0.0, %v973
        %975 = vmatmul.f32.gmra.mxu0 %v761
        %v976 = vpop.f32.mrf.mxu0
        %v977 = vadd.f32 0.0, %v976
        %978 = vmatmul.f32.gmra.mxu0 %v763
        %v979 = vpop.f32.mrf.mxu0
        %v980 = vadd.f32 0.0, %v979
        %981 = vmatmul.f32.gmra.mxu0 %v765
        %v982 = vpop.f32.mrf.mxu0
        %v983 = vadd.f32 0.0, %v982
        %984 = vmatmul.f32.gmra.mxu0 %v767
        %v985 = vpop.f32.mrf.mxu0
        %v986 = vadd.f32 0.0, %v985
        %987 = vmatmul.f32.gmra.mxu0 %v769
        %v988 = vpop.f32.mrf.mxu0
        %v989 = vadd.f32 0.0, %v988
        %990 = vmatmul.f32.gmra.mxu0 %v771
        %v991 = vpop.f32.mrf.mxu0
        %v992 = vadd.f32 0.0, %v991
        %993 = vmatmul.f32.gmra.mxu0 %v773
        %v994 = vpop.f32.mrf.mxu0
        %v995 = vadd.f32 0.0, %v994
        %996 = vmatmul.f32.gmra.mxu0 %v775
        %v997 = vpop.f32.mrf.mxu0
        %v998 = vadd.f32 0.0, %v997
        %999 = vmatmul.f32.gmra.mxu0 %v777
        %v1000 = vpop.f32.mrf.mxu0
        %v1001 = vadd.f32 0.0, %v1000
        %1002 = vmatmul.f32.gmra.mxu0 %v779
        %v1003 = vpop.f32.mrf.mxu0
        %v1004 = vadd.f32 0.0, %v1003
        %1005 = vmatmul.f32.gmra.mxu0 %v781
        %v1006 = vpop.f32.mrf.mxu0
        %v1007 = vadd.f32 0.0, %v1006
        %1008 = vmatmul.f32.gmra.mxu0 %v783
        %v1009 = vpop.f32.mrf.mxu0
        %v1010 = vadd.f32 0.0, %v1009
        %1011 = vmatmul.f32.gmra.mxu0 %v785
        %v1012 = vpop.f32.mrf.mxu0
        %v1013 = vadd.f32 0.0, %v1012
        %1014 = vmatmul.f32.gmra.mxu0 %v787
        %v1015 = vpop.f32.mrf.mxu0
        %v1016 = vadd.f32 0.0, %v1015
        %1017 = vmatmul.f32.gmra.mxu0 %v789
        %v1018 = vpop.f32.mrf.mxu0
        %v1019 = vadd.f32 0.0, %v1018
        %1020 = vmatmul.f32.gmra.mxu0 %v791
        %v1021 = vpop.f32.mrf.mxu0
        %v1022 = vadd.f32 0.0, %v1021
        %1023 = vmatmul.f32.gmra.mxu0 %v793
        %v1024 = vpop.f32.mrf.mxu0
        %v1025 = vadd.f32 0.0, %v1024
        %1026 = vmatmul.f32.gmra.mxu0 %v795
        %v1027 = vpop.f32.mrf.mxu0
        %v1028 = vadd.f32 0.0, %v1027
        %1029 = vmatmul.f32.gmra.mxu0 %v797
        %v1030 = vpop.f32.mrf.mxu0
        %v1031 = vadd.f32 0.0, %v1030
        %1032 = vmatmul.f32.gmra.mxu0 %v934
        %v1033 = vpop.f32.mrf.mxu0
        %v1034 = vadd.f32 0.0, %v1033
        %1035 = vmatmul.f32.gmra.mxu0 %v936
        %v1036 = vpop.f32.mrf.mxu0
        %v1037 = vadd.f32 0.0, %v1036
        %1038 = vdwg.mxu0
        %v1039 = vadd.f32 %v900, %v956
        %v1040 = vadd.f32 %v901, %v959
        %v1041 = vadd.f32 %v902, %v962
        %v1042 = vadd.f32 %v903, %v965
        %v1043 = vadd.f32 %v904, %v968
        %v1044 = vadd.f32 %v905, %v971
        %v1045 = vadd.f32 %v906, %v974
        %v1046 = vadd.f32 %v907, %v977
        %v1047 = vadd.f32 %v908, %v980
        %v1048 = vadd.f32 %v909, %v983
        %v1049 = vadd.f32 %v910, %v986
        %v1050 = vadd.f32 %v911, %v989
        %v1051 = vadd.f32 %v912, %v992
        %v1052 = vadd.f32 %v913, %v995
        %v1053 = vadd.f32 %v914, %v998
        %v1054 = vadd.f32 %v915, %v1001
        %v1055 = vadd.f32 %v916, %v1004
        %v1056 = vadd.f32 %v917, %v1007
        %v1057 = vadd.f32 %v918, %v1010
        %v1058 = vadd.f32 %v919, %v1013
        %v1059 = vadd.f32 %v920, %v1016
        %v1060 = vadd.f32 %v921, %v1019
        %v1061 = vadd.f32 %v922, %v1022
        %v1062 = vadd.f32 %v923, %v1025
        %v1063 = vadd.f32 %v924, %v1028
        %v1064 = vadd.f32 %v925, %v1031
        %v1065 = vadd.f32 %v926, %v1034
        %v1066 = vadd.f32 %v927, %v1037
        %v1068 = vrot.slane %v218, 1
        %v1069 = vrot.slane %v219, 1
        %v1070 = vsel %vm672, %v1068, %v1069
        %v1071 = vrot.slane %v220, 1
        %v1072 = vsel %vm672, %v1069, %v1071
        %v1073 = vsel %vm230, %v1070, 0
        %v1075 = vsel %vm230, %v1072, 0
        %1077 = vmatpush.msra.mxu0 0.0
        %1078 = vmatpush.msra.mxu0 0.0
        %1079 = vmatpush.msra.mxu0 0.0
        %1080 = vmatpush.msra.mxu0 0.0
        %1081 = vmatpush.msra.mxu0 0.0
        %1082 = vmatpush.msra.mxu0 0.0
        %1083 = vmatpush.msra.mxu0 0.0
        %1084 = vmatpush.msra.mxu0 0.0
        %1085 = vmatpush.msra.mxu0 0.0
        %1086 = vmatpush.msra.mxu0 0.0
        %1087 = vmatpush.msra.mxu0 0.0
        %1088 = vmatpush.msra.mxu0 0.0
        %1089 = vmatpush.msra.mxu0 0.0
        %1090 = vmatpush.msra.mxu0 0.0
        %1091 = vmatpush.msra.mxu0 0.0
        %1092 = vmatpush.msra.mxu0 %v228
        %1093 = vmatmul.f32.gmra.mxu0 %v751
        %v1094 = vpop.f32.mrf.mxu0
        %v1095 = vadd.f32 0.0, %v1094
        %1096 = vmatmul.f32.gmra.mxu0 %v753
        %v1097 = vpop.f32.mrf.mxu0
        %v1098 = vadd.f32 0.0, %v1097
        %1099 = vmatmul.f32.gmra.mxu0 %v755
        %v1100 = vpop.f32.mrf.mxu0
        %v1101 = vadd.f32 0.0, %v1100
        %1102 = vmatmul.f32.gmra.mxu0 %v757
        %v1103 = vpop.f32.mrf.mxu0
        %v1104 = vadd.f32 0.0, %v1103
        %1105 = vmatmul.f32.gmra.mxu0 %v759
        %v1106 = vpop.f32.mrf.mxu0
        %v1107 = vadd.f32 0.0, %v1106
        %1108 = vmatmul.f32.gmra.mxu0 %v761
        %v1109 = vpop.f32.mrf.mxu0
        %v1110 = vadd.f32 0.0, %v1109
        %1111 = vmatmul.f32.gmra.mxu0 %v763
        %v1112 = vpop.f32.mrf.mxu0
        %v1113 = vadd.f32 0.0, %v1112
        %1114 = vmatmul.f32.gmra.mxu0 %v765
        %v1115 = vpop.f32.mrf.mxu0
        %v1116 = vadd.f32 0.0, %v1115
        %1117 = vmatmul.f32.gmra.mxu0 %v767
        %v1118 = vpop.f32.mrf.mxu0
        %v1119 = vadd.f32 0.0, %v1118
        %1120 = vmatmul.f32.gmra.mxu0 %v769
        %v1121 = vpop.f32.mrf.mxu0
        %v1122 = vadd.f32 0.0, %v1121
        %1123 = vmatmul.f32.gmra.mxu0 %v771
        %v1124 = vpop.f32.mrf.mxu0
        %v1125 = vadd.f32 0.0, %v1124
        %1126 = vmatmul.f32.gmra.mxu0 %v773
        %v1127 = vpop.f32.mrf.mxu0
        %v1128 = vadd.f32 0.0, %v1127
        %1129 = vmatmul.f32.gmra.mxu0 %v775
        %v1130 = vpop.f32.mrf.mxu0
        %v1131 = vadd.f32 0.0, %v1130
        %1132 = vmatmul.f32.gmra.mxu0 %v777
        %v1133 = vpop.f32.mrf.mxu0
        %v1134 = vadd.f32 0.0, %v1133
        %1135 = vmatmul.f32.gmra.mxu0 %v779
        %v1136 = vpop.f32.mrf.mxu0
        %v1137 = vadd.f32 0.0, %v1136
        %1138 = vmatmul.f32.gmra.mxu0 %v781
        %v1139 = vpop.f32.mrf.mxu0
        %v1140 = vadd.f32 0.0, %v1139
        %1141 = vmatmul.f32.gmra.mxu0 %v783
        %v1142 = vpop.f32.mrf.mxu0
        %v1143 = vadd.f32 0.0, %v1142
        %1144 = vmatmul.f32.gmra.mxu0 %v785
        %v1145 = vpop.f32.mrf.mxu0
        %v1146 = vadd.f32 0.0, %v1145
        %1147 = vmatmul.f32.gmra.mxu0 %v787
        %v1148 = vpop.f32.mrf.mxu0
        %v1149 = vadd.f32 0.0, %v1148
        %1150 = vmatmul.f32.gmra.mxu0 %v789
        %v1151 = vpop.f32.mrf.mxu0
        %v1152 = vadd.f32 0.0, %v1151
        %1153 = vmatmul.f32.gmra.mxu0 %v791
        %v1154 = vpop.f32.mrf.mxu0
        %v1155 = vadd.f32 0.0, %v1154
        %1156 = vmatmul.f32.gmra.mxu0 %v793
        %v1157 = vpop.f32.mrf.mxu0
        %v1158 = vadd.f32 0.0, %v1157
        %1159 = vmatmul.f32.gmra.mxu0 %v795
        %v1160 = vpop.f32.mrf.mxu0
        %v1161 = vadd.f32 0.0, %v1160
        %1162 = vmatmul.f32.gmra.mxu0 %v797
        %v1163 = vpop.f32.mrf.mxu0
        %v1164 = vadd.f32 0.0, %v1163
        %1165 = vmatmul.f32.gmra.mxu0 %v934
        %v1166 = vpop.f32.mrf.mxu0
        %v1167 = vadd.f32 0.0, %v1166
        %1168 = vmatmul.f32.gmra.mxu0 %v936
        %v1169 = vpop.f32.mrf.mxu0
        %v1170 = vadd.f32 0.0, %v1169
        %1171 = vmatmul.f32.gmra.mxu0 %v1073
        %v1172 = vpop.f32.mrf.mxu0
        %v1173 = vadd.f32 0.0, %v1172
        %1174 = vmatmul.f32.gmra.mxu0 %v1075
        %v1175 = vpop.f32.mrf.mxu0
        %v1176 = vadd.f32 0.0, %v1175
        %1177 = vdwg.mxu0
        %v1178 = vadd.f32 %v1039, %v1095
        %v1179 = vadd.f32 %v1040, %v1098
        %v1180 = vadd.f32 %v1041, %v1101
        %v1181 = vadd.f32 %v1042, %v1104
        %v1182 = vadd.f32 %v1043, %v1107
        %v1183 = vadd.f32 %v1044, %v1110
        %v1184 = vadd.f32 %v1045, %v1113
        %v1185 = vadd.f32 %v1046, %v1116
        %v1186 = vadd.f32 %v1047, %v1119
        %v1187 = vadd.f32 %v1048, %v1122
        %v1188 = vadd.f32 %v1049, %v1125
        %v1189 = vadd.f32 %v1050, %v1128
        %v1190 = vadd.f32 %v1051, %v1131
        %v1191 = vadd.f32 %v1052, %v1134
        %v1192 = vadd.f32 %v1053, %v1137
        %v1193 = vadd.f32 %v1054, %v1140
        %v1194 = vadd.f32 %v1055, %v1143
        %v1195 = vadd.f32 %v1056, %v1146
        %v1196 = vadd.f32 %v1057, %v1149
        %v1197 = vadd.f32 %v1058, %v1152
        %v1198 = vadd.f32 %v1059, %v1155
        %v1199 = vadd.f32 %v1060, %v1158
        %v1200 = vadd.f32 %v1061, %v1161
        %v1201 = vadd.f32 %v1062, %v1164
        %v1202 = vadd.f32 %v1063, %v1167
        %v1203 = vadd.f32 %v1064, %v1170
        %v1204 = vadd.f32 %v1065, %v1173
        %v1205 = vadd.f32 %v1066, %v1176
        %vm1206 = vcmask 1045504
        %v1207 = vrot.slane %v173, 2
        %v1208 = vrot.slane %v174, 2
        %v1209 = vsel %vm1206, %v1207, %v1208
        %v1210 = vrot.slane %v175, 2
        %v1211 = vsel %vm1206, %v1208, %v1210
        %v1212 = vrot.slane %v176, 2
        %v1213 = vrot.slane %v177, 2
        %v1214 = vsel %vm1206, %v1212, %v1213
        %v1215 = vrot.slane %v178, 2
        %v1216 = vsel %vm1206, %v1213, %v1215
        %v1217 = vrot.slane %v179, 2
        %v1218 = vrot.slane %v180, 2
        %v1219 = vsel %vm1206, %v1217, %v1218
        %v1220 = vrot.slane %v181, 2
        %v1221 = vsel %vm1206, %v1218, %v1220
        %v1222 = vrot.slane %v182, 2
        %v1223 = vrot.slane %v183, 2
        %v1224 = vsel %vm1206, %v1222, %v1223
        %v1225 = vrot.slane %v184, 2
        %v1226 = vsel %vm1206, %v1223, %v1225
        %v1227 = vrot.slane %v185, 2
        %v1228 = vrot.slane %v186, 2
        %v1229 = vsel %vm1206, %v1227, %v1228
        %v1230 = vrot.slane %v187, 2
        %v1231 = vsel %vm1206, %v1228, %v1230
        %v1232 = vrot.slane %v188, 2
        %v1233 = vrot.slane %v189, 2
        %v1234 = vsel %vm1206, %v1232, %v1233
        %v1235 = vrot.slane %v190, 2
        %v1236 = vsel %vm1206, %v1233, %v1235
        %v1237 = vrot.slane %v191, 2
        %v1238 = vrot.slane %v192, 2
        %v1239 = vsel %vm1206, %v1237, %v1238
        %v1240 = vrot.slane %v193, 2
        %v1241 = vsel %vm1206, %v1238, %v1240
        %v1242 = vrot.slane %v194, 2
        %v1243 = vrot.slane %v195, 2
        %v1244 = vsel %vm1206, %v1242, %v1243
        %v1245 = vrot.slane %v196, 2
        %v1246 = vsel %vm1206, %v1243, %v1245
        %v1247 = vrot.slane %v197, 2
        %v1248 = vrot.slane %v198, 2
        %v1249 = vsel %vm1206, %v1247, %v1248
        %v1250 = vrot.slane %v199, 2
        %v1251 = vsel %vm1206, %v1248, %v1250
        %v1252 = vrot.slane %v200, 2
        %v1253 = vrot.slane %v201, 2
        %v1254 = vsel %vm1206, %v1252, %v1253
        %v1255 = vrot.slane %v202, 2
        %v1256 = vsel %vm1206, %v1253, %v1255
        %v1257 = vrot.slane %v203, 2
        %v1258 = vrot.slane %v204, 2
        %v1259 = vsel %vm1206, %v1257, %v1258
        %v1260 = vrot.slane %v205, 2
        %v1261 = vsel %vm1206, %v1258, %v1260
        %v1262 = vrot.slane %v206, 2
        %v1263 = vrot.slane %v207, 2
        %v1264 = vsel %vm1206, %v1262, %v1263
        %v1265 = vrot.slane %v208, 2
        %v1266 = vsel %vm1206, %v1263, %v1265
        %v1267 = vrot.slane %v209, 2
        %v1268 = vrot.slane %v210, 2
        %v1269 = vsel %vm1206, %v1267, %v1268
        %v1270 = vrot.slane %v211, 2
        %v1271 = vsel %vm1206, %v1268, %v1270
        %v1272 = vrot.slane %v212, 2
        %v1273 = vrot.slane %v213, 2
        %v1274 = vsel %vm1206, %v1272, %v1273
        %v1275 = vrot.slane %v214, 2
        %v1276 = vsel %vm1206, %v1273, %v1275
        %v1277 = vsel %vm230, %v1209, 0
        %v1279 = vsel %vm230, %v1211, 0
        %v1281 = vsel %vm230, %v1214, 0
        %v1283 = vsel %vm230, %v1216, 0
        %v1285 = vsel %vm230, %v1219, 0
        %v1287 = vsel %vm230, %v1221, 0
        %v1289 = vsel %vm230, %v1224, 0
        %v1291 = vsel %vm230, %v1226, 0
        %v1293 = vsel %vm230, %v1229, 0
        %v1295 = vsel %vm230, %v1231, 0
        %v1297 = vsel %vm230, %v1234, 0
        %v1299 = vsel %vm230, %v1236, 0
        %v1301 = vsel %vm230, %v1239, 0
        %v1303 = vsel %vm230, %v1241, 0
        %v1305 = vsel %vm230, %v1244, 0
        %v1307 = vsel %vm230, %v1246, 0
        %v1309 = vsel %vm230, %v1249, 0
        %v1311 = vsel %vm230, %v1251, 0
        %v1313 = vsel %vm230, %v1254, 0
        %v1315 = vsel %vm230, %v1256, 0
        %v1317 = vsel %vm230, %v1259, 0
        %v1319 = vsel %vm230, %v1261, 0
        %v1321 = vsel %vm230, %v1264, 0
        %v1323 = vsel %vm230, %v1266, 0
        %v1325 = vsel %vm230, %v1269, 0
        %v1327 = vsel %vm230, %v1271, 0
        %v1329 = vsel %vm230, %v1274, 0
        %v1331 = vsel %vm230, %v1276, 0
        %1333 = vmatpush.msra.mxu0 0.0
        %1334 = vmatpush.msra.mxu0 0.0
        %1335 = vmatpush.msra.mxu0 0.0
        %1336 = vmatpush.msra.mxu0 0.0
        %1337 = vmatpush.msra.mxu0 0.0
        %1338 = vmatpush.msra.mxu0 0.0
        %1339 = vmatpush.msra.mxu0 0.0
        %1340 = vmatpush.msra.mxu0 0.0
        %1341 = vmatpush.msra.mxu0 0.0
        %1342 = vmatpush.msra.mxu0 0.0
        %1343 = vmatpush.msra.mxu0 0.0
        %1344 = vmatpush.msra.mxu0 0.0
        %1345 = vmatpush.msra.mxu0 0.0
        %1346 = vmatpush.msra.mxu0 0.0
        %1347 = vmatpush.msra.mxu0 0.0
        %1348 = vmatpush.msra.mxu0 %v223
        %1349 = vmatmul.f32.gmra.mxu0 %v1277
        %v1350 = vpop.f32.mrf.mxu0
        %v1351 = vadd.f32 0.0, %v1350
        %1352 = vmatmul.f32.gmra.mxu0 %v1279
        %v1353 = vpop.f32.mrf.mxu0
        %v1354 = vadd.f32 0.0, %v1353
        %1355 = vmatmul.f32.gmra.mxu0 %v1281
        %v1356 = vpop.f32.mrf.mxu0
        %v1357 = vadd.f32 0.0, %v1356
        %1358 = vmatmul.f32.gmra.mxu0 %v1283
        %v1359 = vpop.f32.mrf.mxu0
        %v1360 = vadd.f32 0.0, %v1359
        %1361 = vmatmul.f32.gmra.mxu0 %v1285
        %v1362 = vpop.f32.mrf.mxu0
        %v1363 = vadd.f32 0.0, %v1362
        %1364 = vmatmul.f32.gmra.mxu0 %v1287
        %v1365 = vpop.f32.mrf.mxu0
        %v1366 = vadd.f32 0.0, %v1365
        %1367 = vmatmul.f32.gmra.mxu0 %v1289
        %v1368 = vpop.f32.mrf.mxu0
        %v1369 = vadd.f32 0.0, %v1368
        %1370 = vmatmul.f32.gmra.mxu0 %v1291
        %v1371 = vpop.f32.mrf.mxu0
        %v1372 = vadd.f32 0.0, %v1371
        %1373 = vmatmul.f32.gmra.mxu0 %v1293
        %v1374 = vpop.f32.mrf.mxu0
        %v1375 = vadd.f32 0.0, %v1374
        %1376 = vmatmul.f32.gmra.mxu0 %v1295
        %v1377 = vpop.f32.mrf.mxu0
        %v1378 = vadd.f32 0.0, %v1377
        %1379 = vmatmul.f32.gmra.mxu0 %v1297
        %v1380 = vpop.f32.mrf.mxu0
        %v1381 = vadd.f32 0.0, %v1380
        %1382 = vmatmul.f32.gmra.mxu0 %v1299
        %v1383 = vpop.f32.mrf.mxu0
        %v1384 = vadd.f32 0.0, %v1383
        %1385 = vmatmul.f32.gmra.mxu0 %v1301
        %v1386 = vpop.f32.mrf.mxu0
        %v1387 = vadd.f32 0.0, %v1386
        %1388 = vmatmul.f32.gmra.mxu0 %v1303
        %v1389 = vpop.f32.mrf.mxu0
        %v1390 = vadd.f32 0.0, %v1389
        %1391 = vmatmul.f32.gmra.mxu0 %v1305
        %v1392 = vpop.f32.mrf.mxu0
        %v1393 = vadd.f32 0.0, %v1392
        %1394 = vmatmul.f32.gmra.mxu0 %v1307
        %v1395 = vpop.f32.mrf.mxu0
        %v1396 = vadd.f32 0.0, %v1395
        %1397 = vmatmul.f32.gmra.mxu0 %v1309
        %v1398 = vpop.f32.mrf.mxu0
        %v1399 = vadd.f32 0.0, %v1398
        %1400 = vmatmul.f32.gmra.mxu0 %v1311
        %v1401 = vpop.f32.mrf.mxu0
        %v1402 = vadd.f32 0.0, %v1401
        %1403 = vmatmul.f32.gmra.mxu0 %v1313
        %v1404 = vpop.f32.mrf.mxu0
        %v1405 = vadd.f32 0.0, %v1404
        %1406 = vmatmul.f32.gmra.mxu0 %v1315
        %v1407 = vpop.f32.mrf.mxu0
        %v1408 = vadd.f32 0.0, %v1407
        %1409 = vmatmul.f32.gmra.mxu0 %v1317
        %v1410 = vpop.f32.mrf.mxu0
        %v1411 = vadd.f32 0.0, %v1410
        %1412 = vmatmul.f32.gmra.mxu0 %v1319
        %v1413 = vpop.f32.mrf.mxu0
        %v1414 = vadd.f32 0.0, %v1413
        %1415 = vmatmul.f32.gmra.mxu0 %v1321
        %v1416 = vpop.f32.mrf.mxu0
        %v1417 = vadd.f32 0.0, %v1416
        %1418 = vmatmul.f32.gmra.mxu0 %v1323
        %v1419 = vpop.f32.mrf.mxu0
        %v1420 = vadd.f32 0.0, %v1419
        %1421 = vmatmul.f32.gmra.mxu0 %v1325
        %v1422 = vpop.f32.mrf.mxu0
        %v1423 = vadd.f32 0.0, %v1422
        %1424 = vmatmul.f32.gmra.mxu0 %v1327
        %v1425 = vpop.f32.mrf.mxu0
        %v1426 = vadd.f32 0.0, %v1425
        %1427 = vmatmul.f32.gmra.mxu0 %v1329
        %v1428 = vpop.f32.mrf.mxu0
        %v1429 = vadd.f32 0.0, %v1428
        %1430 = vmatmul.f32.gmra.mxu0 %v1331
        %v1431 = vpop.f32.mrf.mxu0
        %v1432 = vadd.f32 0.0, %v1431
        %1433 = vdwg.mxu0
        %v1434 = vadd.f32 %v1178, %v1351
        %v1435 = vadd.f32 %v1179, %v1354
        %v1436 = vadd.f32 %v1180, %v1357
        %v1437 = vadd.f32 %v1181, %v1360
        %v1438 = vadd.f32 %v1182, %v1363
        %v1439 = vadd.f32 %v1183, %v1366
        %v1440 = vadd.f32 %v1184, %v1369
        %v1441 = vadd.f32 %v1185, %v1372
        %v1442 = vadd.f32 %v1186, %v1375
        %v1443 = vadd.f32 %v1187, %v1378
        %v1444 = vadd.f32 %v1188, %v1381
        %v1445 = vadd.f32 %v1189, %v1384
        %v1446 = vadd.f32 %v1190, %v1387
        %v1447 = vadd.f32 %v1191, %v1390
        %v1448 = vadd.f32 %v1192, %v1393
        %v1449 = vadd.f32 %v1193, %v1396
        %v1450 = vadd.f32 %v1194, %v1399
        %v1451 = vadd.f32 %v1195, %v1402
        %v1452 = vadd.f32 %v1196, %v1405
        %v1453 = vadd.f32 %v1197, %v1408
        %v1454 = vadd.f32 %v1198, %v1411
        %v1455 = vadd.f32 %v1199, %v1414
        %v1456 = vadd.f32 %v1200, %v1417
        %v1457 = vadd.f32 %v1201, %v1420
        %v1458 = vadd.f32 %v1202, %v1423
        %v1459 = vadd.f32 %v1203, %v1426
        %v1460 = vadd.f32 %v1204, %v1429
        %v1461 = vadd.f32 %v1205, %v1432
        %v1462 = vrot.slane %v215, 2
        %v1463 = vrot.slane %v216, 2
        %v1464 = vsel %vm1206, %v1462, %v1463
        %v1465 = vrot.slane %v217, 2
        %v1466 = vsel %vm1206, %v1463, %v1465
        %v1467 = vsel %vm230, %v1464, 0
        %v1469 = vsel %vm230, %v1466, 0
        %1471 = vmatpush.msra.mxu0 0.0
        %1472 = vmatpush.msra.mxu0 0.0
        %1473 = vmatpush.msra.mxu0 0.0
        %1474 = vmatpush.msra.mxu0 0.0
        %1475 = vmatpush.msra.mxu0 0.0
        %1476 = vmatpush.msra.mxu0 0.0
        %1477 = vmatpush.msra.mxu0 0.0
        %1478 = vmatpush.msra.mxu0 0.0
        %1479 = vmatpush.msra.mxu0 0.0
        %1480 = vmatpush.msra.mxu0 0.0
        %1481 = vmatpush.msra.mxu0 0.0
        %1482 = vmatpush.msra.mxu0 0.0
        %1483 = vmatpush.msra.mxu0 0.0
        %1484 = vmatpush.msra.mxu0 0.0
        %1485 = vmatpush.msra.mxu0 0.0
        %1486 = vmatpush.msra.mxu0 %v226
        %1487 = vmatmul.f32.gmra.mxu0 %v1281
        %v1488 = vpop.f32.mrf.mxu0
        %v1489 = vadd.f32 0.0, %v1488
        %1490 = vmatmul.f32.gmra.mxu0 %v1283
        %v1491 = vpop.f32.mrf.mxu0
        %v1492 = vadd.f32 0.0, %v1491
        %1493 = vmatmul.f32.gmra.mxu0 %v1285
        %v1494 = vpop.f32.mrf.mxu0
        %v1495 = vadd.f32 0.0, %v1494
        %1496 = vmatmul.f32.gmra.mxu0 %v1287
        %v1497 = vpop.f32.mrf.mxu0
        %v1498 = vadd.f32 0.0, %v1497
        %1499 = vmatmul.f32.gmra.mxu0 %v1289
        %v1500 = vpop.f32.mrf.mxu0
        %v1501 = vadd.f32 0.0, %v1500
        %1502 = vmatmul.f32.gmra.mxu0 %v1291
        %v1503 = vpop.f32.mrf.mxu0
        %v1504 = vadd.f32 0.0, %v1503
        %1505 = vmatmul.f32.gmra.mxu0 %v1293
        %v1506 = vpop.f32.mrf.mxu0
        %v1507 = vadd.f32 0.0, %v1506
        %1508 = vmatmul.f32.gmra.mxu0 %v1295
        %v1509 = vpop.f32.mrf.mxu0
        %v1510 = vadd.f32 0.0, %v1509
        %1511 = vmatmul.f32.gmra.mxu0 %v1297
        %v1512 = vpop.f32.mrf.mxu0
        %v1513 = vadd.f32 0.0, %v1512
        %1514 = vmatmul.f32.gmra.mxu0 %v1299
        %v1515 = vpop.f32.mrf.mxu0
        %v1516 = vadd.f32 0.0, %v1515
        %1517 = vmatmul.f32.gmra.mxu0 %v1301
        %v1518 = vpop.f32.mrf.mxu0
        %v1519 = vadd.f32 0.0, %v1518
        %1520 = vmatmul.f32.gmra.mxu0 %v1303
        %v1521 = vpop.f32.mrf.mxu0
        %v1522 = vadd.f32 0.0, %v1521
        %1523 = vmatmul.f32.gmra.mxu0 %v1305
        %v1524 = vpop.f32.mrf.mxu0
        %v1525 = vadd.f32 0.0, %v1524
        %1526 = vmatmul.f32.gmra.mxu0 %v1307
        %v1527 = vpop.f32.mrf.mxu0
        %v1528 = vadd.f32 0.0, %v1527
        %1529 = vmatmul.f32.gmra.mxu0 %v1309
        %v1530 = vpop.f32.mrf.mxu0
        %v1531 = vadd.f32 0.0, %v1530
        %1532 = vmatmul.f32.gmra.mxu0 %v1311
        %v1533 = vpop.f32.mrf.mxu0
        %v1534 = vadd.f32 0.0, %v1533
        %1535 = vmatmul.f32.gmra.mxu0 %v1313
        %v1536 = vpop.f32.mrf.mxu0
        %v1537 = vadd.f32 0.0, %v1536
        %1538 = vmatmul.f32.gmra.mxu0 %v1315
        %v1539 = vpop.f32.mrf.mxu0
        %v1540 = vadd.f32 0.0, %v1539
        %1541 = vmatmul.f32.gmra.mxu0 %v1317
        %v1542 = vpop.f32.mrf.mxu0
        %v1543 = vadd.f32 0.0, %v1542
        %1544 = vmatmul.f32.gmra.mxu0 %v1319
        %v1545 = vpop.f32.mrf.mxu0
        %v1546 = vadd.f32 0.0, %v1545
        %1547 = vmatmul.f32.gmra.mxu0 %v1321
        %v1548 = vpop.f32.mrf.mxu0
        %v1549 = vadd.f32 0.0, %v1548
        %1550 = vmatmul.f32.gmra.mxu0 %v1323
        %v1551 = vpop.f32.mrf.mxu0
        %v1552 = vadd.f32 0.0, %v1551
        %1553 = vmatmul.f32.gmra.mxu0 %v1325
        %v1554 = vpop.f32.mrf.mxu0
        %v1555 = vadd.f32 0.0, %v1554
        %1556 = vmatmul.f32.gmra.mxu0 %v1327
        %v1557 = vpop.f32.mrf.mxu0
        %v1558 = vadd.f32 0.0, %v1557
        %1559 = vmatmul.f32.gmra.mxu0 %v1329
        %v1560 = vpop.f32.mrf.mxu0
        %v1561 = vadd.f32 0.0, %v1560
        %1562 = vmatmul.f32.gmra.mxu0 %v1331
        %v1563 = vpop.f32.mrf.mxu0
        %v1564 = vadd.f32 0.0, %v1563
        %1565 = vmatmul.f32.gmra.mxu0 %v1467
        %v1566 = vpop.f32.mrf.mxu0
        %v1567 = vadd.f32 0.0, %v1566
        %1568 = vmatmul.f32.gmra.mxu0 %v1469
        %v1569 = vpop.f32.mrf.mxu0
        %v1570 = vadd.f32 0.0, %v1569
        %1571 = vdwg.mxu0
        %v1572 = vadd.f32 %v1434, %v1489
        %v1573 = vadd.f32 %v1435, %v1492
        %v1574 = vadd.f32 %v1436, %v1495
        %v1575 = vadd.f32 %v1437, %v1498
        %v1576 = vadd.f32 %v1438, %v1501
        %v1577 = vadd.f32 %v1439, %v1504
        %v1578 = vadd.f32 %v1440, %v1507
        %v1579 = vadd.f32 %v1441, %v1510
        %v1580 = vadd.f32 %v1442, %v1513
        %v1581 = vadd.f32 %v1443, %v1516
        %v1582 = vadd.f32 %v1444, %v1519
        %v1583 = vadd.f32 %v1445, %v1522
        %v1584 = vadd.f32 %v1446, %v1525
        %v1585 = vadd.f32 %v1447, %v1528
        %v1586 = vadd.f32 %v1448, %v1531
        %v1587 = vadd.f32 %v1449, %v1534
        %v1588 = vadd.f32 %v1450, %v1537
        %v1589 = vadd.f32 %v1451, %v1540
        %v1590 = vadd.f32 %v1452, %v1543
        %v1591 = vadd.f32 %v1453, %v1546
        %v1592 = vadd.f32 %v1454, %v1549
        %v1593 = vadd.f32 %v1455, %v1552
        %v1594 = vadd.f32 %v1456, %v1555
        %v1595 = vadd.f32 %v1457, %v1558
        %v1596 = vadd.f32 %v1458, %v1561
        %v1597 = vadd.f32 %v1459, %v1564
        %v1598 = vadd.f32 %v1460, %v1567
        %v1599 = vadd.f32 %v1461, %v1570
        %v1600 = vrot.slane %v218, 2
        %v1601 = vrot.slane %v219, 2
        %v1602 = vsel %vm1206, %v1600, %v1601
        %v1603 = vrot.slane %v220, 2
        %v1604 = vsel %vm1206, %v1601, %v1603
        %v1605 = vsel %vm230, %v1602, 0
        %v1607 = vsel %vm230, %v1604, 0
        %1609 = vmatpush.msra.mxu0 0.0
        %1610 = vmatpush.msra.mxu0 0.0
        %1611 = vmatpush.msra.mxu0 0.0
        %1612 = vmatpush.msra.mxu0 0.0
        %1613 = vmatpush.msra.mxu0 0.0
        %1614 = vmatpush.msra.mxu0 0.0
        %1615 = vmatpush.msra.mxu0 0.0
        %1616 = vmatpush.msra.mxu0 0.0
        %1617 = vmatpush.msra.mxu0 0.0
        %1618 = vmatpush.msra.mxu0 0.0
        %1619 = vmatpush.msra.mxu0 0.0
        %1620 = vmatpush.msra.mxu0 0.0
        %1621 = vmatpush.msra.mxu0 0.0
        %1622 = vmatpush.msra.mxu0 0.0
        %1623 = vmatpush.msra.mxu0 0.0
        %1624 = vmatpush.msra.mxu0 %v229
        %1625 = vmatmul.f32.gmra.mxu0 %v1285
        %v1626 = vpop.f32.mrf.mxu0
        %v1627 = vadd.f32 0.0, %v1626
        %1628 = vmatmul.f32.gmra.mxu0 %v1287
        %v1629 = vpop.f32.mrf.mxu0
        %v1630 = vadd.f32 0.0, %v1629
        %1631 = vmatmul.f32.gmra.mxu0 %v1289
        %v1632 = vpop.f32.mrf.mxu0
        %v1633 = vadd.f32 0.0, %v1632
        %1634 = vmatmul.f32.gmra.mxu0 %v1291
        %v1635 = vpop.f32.mrf.mxu0
        %v1636 = vadd.f32 0.0, %v1635
        %1637 = vmatmul.f32.gmra.mxu0 %v1293
        %v1638 = vpop.f32.mrf.mxu0
        %v1639 = vadd.f32 0.0, %v1638
        %1640 = vmatmul.f32.gmra.mxu0 %v1295
        %v1641 = vpop.f32.mrf.mxu0
        %v1642 = vadd.f32 0.0, %v1641
        %1643 = vmatmul.f32.gmra.mxu0 %v1297
        %v1644 = vpop.f32.mrf.mxu0
        %v1645 = vadd.f32 0.0, %v1644
        %1646 = vmatmul.f32.gmra.mxu0 %v1299
        %v1647 = vpop.f32.mrf.mxu0
        %v1648 = vadd.f32 0.0, %v1647
        %1649 = vmatmul.f32.gmra.mxu0 %v1301
        %v1650 = vpop.f32.mrf.mxu0
        %v1651 = vadd.f32 0.0, %v1650
        %1652 = vmatmul.f32.gmra.mxu0 %v1303
        %v1653 = vpop.f32.mrf.mxu0
        %v1654 = vadd.f32 0.0, %v1653
        %1655 = vmatmul.f32.gmra.mxu0 %v1305
        %v1656 = vpop.f32.mrf.mxu0
        %v1657 = vadd.f32 0.0, %v1656
        %1658 = vmatmul.f32.gmra.mxu0 %v1307
        %v1659 = vpop.f32.mrf.mxu0
        %v1660 = vadd.f32 0.0, %v1659
        %1661 = vmatmul.f32.gmra.mxu0 %v1309
        %v1662 = vpop.f32.mrf.mxu0
        %v1663 = vadd.f32 0.0, %v1662
        %1664 = vmatmul.f32.gmra.mxu0 %v1311
        %v1665 = vpop.f32.mrf.mxu0
        %v1666 = vadd.f32 0.0, %v1665
        %1667 = vmatmul.f32.gmra.mxu0 %v1313
        %v1668 = vpop.f32.mrf.mxu0
        %v1669 = vadd.f32 0.0, %v1668
        %1670 = vmatmul.f32.gmra.mxu0 %v1315
        %v1671 = vpop.f32.mrf.mxu0
        %v1672 = vadd.f32 0.0, %v1671
        %1673 = vmatmul.f32.gmra.mxu0 %v1317
        %v1674 = vpop.f32.mrf.mxu0
        %v1675 = vadd.f32 0.0, %v1674
        %1676 = vmatmul.f32.gmra.mxu0 %v1319
        %v1677 = vpop.f32.mrf.mxu0
        %v1678 = vadd.f32 0.0, %v1677
        %1679 = vmatmul.f32.gmra.mxu0 %v1321
        %v1680 = vpop.f32.mrf.mxu0
        %v1681 = vadd.f32 0.0, %v1680
        %1682 = vmatmul.f32.gmra.mxu0 %v1323
        %v1683 = vpop.f32.mrf.mxu0
        %v1684 = vadd.f32 0.0, %v1683
        %1685 = vmatmul.f32.gmra.mxu0 %v1325
        %v1686 = vpop.f32.mrf.mxu0
        %v1687 = vadd.f32 0.0, %v1686
        %1688 = vmatmul.f32.gmra.mxu0 %v1327
        %v1689 = vpop.f32.mrf.mxu0
        %v1690 = vadd.f32 0.0, %v1689
        %1691 = vmatmul.f32.gmra.mxu0 %v1329
        %v1692 = vpop.f32.mrf.mxu0
        %v1693 = vadd.f32 0.0, %v1692
        %1694 = vmatmul.f32.gmra.mxu0 %v1331
        %v1695 = vpop.f32.mrf.mxu0
        %v1696 = vadd.f32 0.0, %v1695
        %1697 = vmatmul.f32.gmra.mxu0 %v1467
        %v1698 = vpop.f32.mrf.mxu0
        %v1699 = vadd.f32 0.0, %v1698
        %1700 = vmatmul.f32.gmra.mxu0 %v1469
        %v1701 = vpop.f32.mrf.mxu0
        %v1702 = vadd.f32 0.0, %v1701
        %1703 = vmatmul.f32.gmra.mxu0 %v1605
        %v1704 = vpop.f32.mrf.mxu0
        %v1705 = vadd.f32 0.0, %v1704
        %1706 = vmatmul.f32.gmra.mxu0 %v1607
        %v1707 = vpop.f32.mrf.mxu0
        %v1708 = vadd.f32 0.0, %v1707
        %1709 = vdwg.mxu0
        %v1710 = vadd.f32 %v1572, %v1627
        %v1711 = vadd.f32 %v1573, %v1630
        %v1712 = vadd.f32 %v1574, %v1633
        %v1713 = vadd.f32 %v1575, %v1636
        %v1714 = vadd.f32 %v1576, %v1639
        %v1715 = vadd.f32 %v1577, %v1642
        %v1716 = vadd.f32 %v1578, %v1645
        %v1717 = vadd.f32 %v1579, %v1648
        %v1718 = vadd.f32 %v1580, %v1651
        %v1719 = vadd.f32 %v1581, %v1654
        %v1720 = vadd.f32 %v1582, %v1657
        %v1721 = vadd.f32 %v1583, %v1660
        %v1722 = vadd.f32 %v1584, %v1663
        %v1723 = vadd.f32 %v1585, %v1666
        %v1724 = vadd.f32 %v1586, %v1669
        %v1725 = vadd.f32 %v1587, %v1672
        %v1726 = vadd.f32 %v1588, %v1675
        %v1727 = vadd.f32 %v1589, %v1678
        %v1728 = vadd.f32 %v1590, %v1681
        %v1729 = vadd.f32 %v1591, %v1684
        %v1730 = vadd.f32 %v1592, %v1687
        %v1731 = vadd.f32 %v1593, %v1690
        %v1732 = vadd.f32 %v1594, %v1693
        %v1733 = vadd.f32 %v1595, %v1696
        %v1734 = vadd.f32 %v1596, %v1699
        %v1735 = vadd.f32 %v1597, %v1702
        %v1736 = vadd.f32 %v1598, %v1705
        %v1737 = vadd.f32 %v1599, %v1708
        %1738 = vst [vmem:[%s163] sm:$0xff] %v1710
        %1739 = vst [vmem:[%s163 + $0x8] sm:$0xff] %v1711
        %1740 = vst [vmem:[%s163 + $0x10] sm:$0xff] %v1712
        %1741 = vst [vmem:[%s163 + $0x18] sm:$0xff] %v1713
        %1742 = vst [vmem:[%s163 + $0x20] sm:$0xff] %v1714
        %1743 = vst [vmem:[%s163 + $0x28] sm:$0xff] %v1715
        %1744 = vst [vmem:[%s163 + $0x30] sm:$0xff] %v1716
        %1745 = vst [vmem:[%s163 + $0x38] sm:$0xff] %v1717
        %1746 = vst [vmem:[%s163 + $0x40] sm:$0xff] %v1718
        %1747 = vst [vmem:[%s163 + $0x48] sm:$0xff] %v1719
        %1748 = vst [vmem:[%s163 + $0x50] sm:$0xff] %v1720
        %1749 = vst [vmem:[%s163 + $0x58] sm:$0xff] %v1721
        %1750 = vst [vmem:[%s163 + $0x60] sm:$0xff] %v1722
        %1751 = vst [vmem:[%s163 + $0x68] sm:$0xff] %v1723
        %1752 = vst [vmem:[%s163 + $0x70] sm:$0xff] %v1724
        %1753 = vst [vmem:[%s163 + $0x78] sm:$0xff] %v1725
        %1754 = vst [vmem:[%s163 + $0x80] sm:$0xff] %v1726
        %1755 = vst [vmem:[%s163 + $0x88] sm:$0xff] %v1727
        %1756 = vst [vmem:[%s163 + $0x90] sm:$0xff] %v1728
        %1757 = vst [vmem:[%s163 + $0x98] sm:$0xff] %v1729
        %1758 = vst [vmem:[%s163 + $0xa0] sm:$0xff] %v1730
        %1759 = vst [vmem:[%s163 + $0xa8] sm:$0xff] %v1731
        %1760 = vst [vmem:[%s163 + $0xb0] sm:$0xff] %v1732
        %1761 = vst [vmem:[%s163 + $0xb8] sm:$0xff] %v1733
        %1762 = vst [vmem:[%s163 + $0xc0] sm:$0xff] %v1734
        %1763 = vst [vmem:[%s163 + $0xc8] sm:$0xff] %v1735
        %1764 = vst [vmem:[%s163 + $0xd0] sm:$0xff] %v1736
        %1765 = vst [vmem:[%s163 + $0xd8] sm:$0xff] %v1737
        %s1766 = sand.u32 %s90, 1
        %s1767 = scalar_lea.sflag [#allocation3], %s1766
        %s1768 = sand.u32 %s90, 1
        %s1769 = smul.addr %s1768, 224
        %s1770 = scalar_lea.vmem [#allocation2], %s1769
        // Predicated region
        $region29: #{tpu_custom_call.1} parent=27 // pred_check
          %p1771 = pneg %p100
        $region30: #{tpu_custom_call.1} parent=27 // pred_check_branch
          %1773 = sbr.rel (%p1771) target = $region32
        $region31: #{tpu_custom_call.1} parent=27 // pred_region
          %1775 = vsyncadd %s1767, 0
          %s1776 = smul.addr %s20, 28
          %s1777 = sadd.s32 %s21, %s1776
          %s1778 = smul.addr %s1777, 8
          %s1779 = scalar_lea.hbm %s2, %s1778
          %s1780 = sshll.u32 %s1770, 4
          %s1781 = int_to_ptr.vmem [resolvable:$true] %s1780
          %s1782 = sshll.u32 %s1779, 4
          %s1783 = int_to_ptr.hbm [resolvable:$true] %s1782
          %1788 = dma.vmem_to_hbm [thread:$0]  %s1781, 3584, %s1783, %s1767, 128, 128, 8
        $region32: #{tpu_custom_call.1} parent=27 // pred_fallthru
          _
      $region28: #{tpu_custom_call.1} parent=5 // pred_fallthru
        _
      %p1789 = scmp.le.s32.totalorder 2, %s11
      // Predicated region
      $region33: #{tpu_custom_call.1} parent=5 // pred_check
        %p1790 = pneg %p1789
      $region34: #{tpu_custom_call.1} parent=5 // pred_check_branch
        %1792 = sbr.rel (%p1790) target = $region36
      $region35: #{tpu_custom_call.1} parent=5 // pred_region
        %s1793 = ssub.s32 %s11, 2
        // Predicated region
        $region37: #{tpu_custom_call.1} parent=35 // pred_check
          %p1794 = pneg %p106
        $region38: #{tpu_custom_call.1} parent=35 // pred_check_branch
          %1796 = sbr.rel (%p1794) target = $region40
        $region39: #{tpu_custom_call.1} parent=35 // pred_region
          %s1797 = sand.u32 %s91, 1
          %s1798 = scalar_lea.sflag [#allocation3], %s1797
          %s1799 = sand.u32 %s91, 1
          %s1800 = smul.addr %s1799, 224
          %s1801 = scalar_lea.vmem [#allocation2], %s1800
          %1803 = dma.done %s1798, 3584
        $region40: #{tpu_custom_call.1} parent=35 // pred_fallthru
          _
      $region36: #{tpu_custom_call.1} parent=5 // pred_fallthru
        _
    $region6: #{tpu_custom_call.1} parent=1 // loop_footer
      %s15 = sadd.s32 1, %s11
    $region7: #{tpu_custom_call.1} parent=1 // loop_footer_branch
      %10 = sbr.rel target = $region3
    $region8: #{tpu_custom_call.1} parent=1 // loop_exit
      _
    %1804 = vsyncpa [#allocation3], 1
    %s1805 = scalar_lea.sflag [#allocation3], 1
    %1806 = vsyncpa %s1805, 1

</llo_original>
